<compile_context>
chip_gen: v7x
topology: tpu7x:2x2x1
jax: 0.10.0
libtpu: 0.0.40
codegen_flags: <defaults>
</compile_context>

<pallas_src>
import jax
import jax.numpy as jnp
from jax import lax
from jax.experimental import pallas as pl
from jax.experimental.pallas import tpu as pltpu


def _pick_row_tile(Ho, H, stride):
    """Largest output-row tile TH with TH*stride a multiple of 8, Ho % TH == 0,
    preferring at least 2 tiles (more grid steps -> better DMA pipelining)."""
    best = None
    for th in (128, 64, 32, 16, 8):
        if th > Ho or Ho % th != 0 or (th * stride) % 8 != 0:
            continue
        if th * stride > H or H < 8:
            continue
        if (Ho // th - 1) * th * stride >= H:
            continue
        if Ho // th >= 2:
            return th
        if best is None:
            best = th
    return best


def residual_depth_wise(feat, params, *, kernel_size, stride, padding):
    """feat: (N, C, H, W) NCHW float array -> (N, C, Ho, Wo)."""
    N, Cin, H, W = feat.shape
    Cout = params["w_pw"].shape[1]
    assert Cout == Cin, "module forward requires out_channel == in_channel"
    C = Cout
    K, s, p = kernel_size, stride, padding
    eps = 1e-5
    Ho = (H + 2 * p - K) // s + 1
    Wo = (W + 2 * p - K) // s + 1
    out_dtype = feat.dtype
    f32 = jnp.float32

    # ---- fold BatchNorm (eval) + conv biases into per-channel scale/bias ----
    s1 = (params["bn1_gamma"] / jnp.sqrt(params["bn1_var"] + eps)).astype(f32)
    b1 = ((params["b_pw"] - params["bn1_mean"]) * s1 + params["bn1_beta"]).astype(f32)
    s2 = (params["bn2_gamma"] / jnp.sqrt(params["bn2_var"] + eps)).astype(f32)
    b2 = ((params["b_dw"] + params["b_sc"] - params["bn2_mean"]) * s2
          + params["bn2_beta"]).astype(f32)
    w_pw = params["w_pw"].astype(f32)                       # (Cin, Cout)
    w_dw = params["w_dw"].reshape(C, K * K).T.astype(f32)   # (K*K, C)  long axis last
    w_sc = params["w_sc"].reshape(C, K * K).T.astype(f32)   # (K*K, C)

    # ---- spatial row tiling ---------------------------------------------------
    next_need = max(0, K - p - s)            # halo rows needed below each tile
    th = _pick_row_tile(Ho, H, s) if (0 <= p <= 8 and next_need <= 8) else None
    TH = th if th is not None else Ho        # output rows per grid step
    T = Ho // TH
    stride_rows = TH * s                     # input rows advanced per grid step
    TH_in = (TH - 1) * s + K                 # input rows consumed per grid step
    has_prev = (T > 1) and (p > 0)
    has_next = (T > 1) and (next_need > 0)
    cur_rows = stride_rows if T > 1 else H
    TH_a = max(p + cur_rows + (next_need if has_next else 0), TH_in)
    Wp2 = W + 2 * p                          # width of the zero-padded window
    Wfull = W + 2 * p - K + 1                # stride-1 (full resolution) conv width
    R8 = stride_rows // 8 if T > 1 else 1
    nH8 = -(-H // 8)
    cur_always_valid = (T == 1) or ((T - 1) * stride_rows + cur_rows <= H)

    def kernel(*refs):
        idx = 0
        prev_ref = None
        next_ref = None
        if has_prev:
            prev_ref = refs[idx]
            idx += 1
        cur_ref = refs[idx]
        idx += 1
        if has_next:
            next_ref = refs[idx]
            idx += 1
        (w_pw_ref, s1_ref, b1_ref, w_dw_ref, w_sc_ref, s2_ref, b2_ref,
         o_ref, f_win) = refs[idx:]

        i = pl.program_id(1)
        g0 = i * stride_rows - p             # global input row of window row 0

        # validity of each window position wrt. the (conceptually) padded image
        r_ids = lax.broadcasted_iota(jnp.int32, (TH_a, Wp2), 0) + g0
        c_ids = lax.broadcasted_iota(jnp.int32, (TH_a, Wp2), 1)
        row_ok = jnp.logical_and(r_ids >= 0, r_ids < H)
        valid = jnp.logical_and(row_ok,
                                jnp.logical_and(c_ids >= p, c_ids < p + W))

        # ---- assemble zero-padded input window (all channels) in VMEM -------
        if p > 0:
            f_win[:, :, 0:p] = jnp.zeros((C, TH_a, p), f32)
            f_win[:, :, p + W:Wp2] = jnp.zeros((C, TH_a, p), f32)
        if has_prev:
            vals = prev_ref[0, :, 8 - p:8, :].astype(f32)
            f_win[:, 0:p, p:p + W] = jnp.where(row_ok[0:p, p:p + W][None], vals, 0.0)
        elif p > 0:                          # single-tile case: top rows are padding
            f_win[:, 0:p, p:p + W] = jnp.zeros((C, p, W), f32)
        cur_vals = cur_ref[0].astype(f32)
        if not cur_always_valid:
            cur_vals = jnp.where(row_ok[p:p + cur_rows, p:p + W][None], cur_vals, 0.0)
        f_win[:, p:p + cur_rows, p:p + W] = cur_vals
        r_bot = p + cur_rows
        if has_next:
            vals = next_ref[0, :, 0:next_need, :].astype(f32)
            f_win[:, r_bot:r_bot + next_need, p:p + W] = jnp.where(
                row_ok[r_bot:r_bot + next_need, p:p + W][None], vals, 0.0)
            r_bot += next_need
        if r_bot < TH_a:                     # single-tile case: bottom padding rows
            f_win[:, r_bot:TH_a, :] = jnp.zeros((C, TH_a - r_bot, Wp2), f32)

        f_ch = [f_win[c] for c in range(C)]  # per-channel (TH_a, Wp2) windows

        # ---- fused pointwise + depthwise (+ shortcut) per output channel ----
        for co in range(C):
            # 1x1 conv as VPU broadcast-MAC over input channels (small C).
            acc = f_ch[0] * w_pw_ref[0, co]
            for ci in range(1, C):
                acc = acc + f_ch[ci] * w_pw_ref[ci, co]
            x1 = jnp.maximum(acc * s1_ref[0, co] + b1_ref[0, co], 0.0)
            x1 = jnp.where(valid, x1, 0.0)   # zero-padded pointwise activation
            fco = f_ch[co]                   # zero-padded input channel (shortcut)

            dacc = jnp.zeros((TH, Wfull), f32)
            for ki in range(K):
                rs = slice(ki, ki + (TH - 1) * s + 1, s)
                x1r = x1[rs, :]
                fr = fco[rs, :]
                for kj in range(K):
                    cs = slice(kj, kj + Wfull)
                    # NOTE: lane-offset slices; with W padded to a multiple of
                    # 128 these shifts could become pltpu.roll (XLU) instead.
                    dacc = (dacc
                            + x1r[:, cs] * w_dw_ref[ki * K + kj, co]
                            + fr[:, cs] * w_sc_ref[ki * K + kj, co])
            y = jnp.maximum(dacc * s2_ref[0, co] + b2_ref[0, co], 0.0)
            if s > 1:
                y = y[:, ::s]
            o_ref[0, co, :, :] = y[:, :Wo].astype(o_ref.dtype)

    # ---- specs / pallas_call --------------------------------------------------
    smem = pl.BlockSpec(memory_space=pltpu.MemorySpace.SMEM)
    inputs, in_specs = [], []
    if has_prev:                             # 8-row block just above the tile
        inputs.append(feat)
        in_specs.append(pl.BlockSpec(
            (1, C, 8, W), lambda n, i: (n, 0, jnp.maximum(i * R8 - 1, 0), 0)))
    inputs.append(feat)                      # main rows of the tile
    if T > 1:
        in_specs.append(pl.BlockSpec((1, C, cur_rows, W), lambda n, i: (n, 0, i, 0)))
    else:
        in_specs.append(pl.BlockSpec((1, C, cur_rows, W), lambda n, i: (n, 0, 0, 0)))
    if has_next:                             # 8-row block just below the tile
        inputs.append(feat)
        in_specs.append(pl.BlockSpec(
            (1, C, 8, W),
            lambda n, i: (n, 0, jnp.minimum((i + 1) * R8, nH8 - 1), 0)))
    inputs += [w_pw, s1.reshape(1, C), b1.reshape(1, C),
               w_dw, w_sc, s2.reshape(1, C), b2.reshape(1, C)]
    in_specs += [smem] * 7

    out = pl.pallas_call(
        kernel,
        grid=(N, T),
        in_specs=in_specs,
        out_specs=pl.BlockSpec((1, C, TH, Wo), lambda n, i: (n, 0, i, 0)),
        out_shape=jax.ShapeDtypeStruct((N, C, Ho, Wo), out_dtype),
        scratch_shapes=[pltpu.VMEM((C, TH_a, Wp2), jnp.float32)],
        compiler_params=pltpu.CompilerParams(
            dimension_semantics=("parallel", "parallel")),
    )(*inputs)
    return out


# ---------------------------------------------------------------------------
# Deterministic parameter init (synthetic; shapes follow the module __init__)
# ---------------------------------------------------------------------------
def init_params(key, in_channel, out_channel, kernel_size):
    ks = jax.random.split(key, 14)
    f32 = jnp.float32
    K = kernel_size
    return {
        # point_wise: Conv2d(Cin, Cout, 1) -> weight stored as [Cin, Cout]
        "w_pw": 0.2 * jax.random.normal(ks[0], (in_channel, out_channel), f32),
        "b_pw": 0.1 * jax.random.normal(ks[1], (out_channel,), f32),
        # depth_wise / short_cut: Conv2d(C, C, K, groups=C) -> weight [C, K, K]
        "w_dw": 0.2 * jax.random.normal(ks[2], (out_channel, K, K), f32),
        "b_dw": 0.1 * jax.random.normal(ks[3], (out_channel,), f32),
        "w_sc": 0.2 * jax.random.normal(ks[4], (out_channel, K, K), f32),
        "b_sc": 0.1 * jax.random.normal(ks[5], (out_channel,), f32),
        # bn_point (eval mode)
        "bn1_gamma": 1.0 + 0.1 * jax.random.normal(ks[6], (out_channel,), f32),
        "bn1_beta": 0.1 * jax.random.normal(ks[7], (out_channel,), f32),
        "bn1_mean": 0.1 * jax.random.normal(ks[8], (out_channel,), f32),
        "bn1_var": jax.random.uniform(ks[9], (out_channel,), f32, 0.5, 1.5),
        # bn_depth (eval mode)
        "bn2_gamma": 1.0 + 0.1 * jax.random.normal(ks[10], (out_channel,), f32),
        "bn2_beta": 0.1 * jax.random.normal(ks[11], (out_channel,), f32),
        "bn2_mean": 0.1 * jax.random.normal(ks[12], (out_channel,), f32),
        "bn2_var": jax.random.uniform(ks[13], (out_channel,), f32, 0.5, 1.5),
    }


# ---------------------------------------------------------------------------
# Pure-JAX reference (independent path through lax.conv) for verification
# ---------------------------------------------------------------------------
def reference(feat, params, *, kernel_size, stride, padding):
    eps = 1e-5
    K, s, p = kernel_size, stride, padding
    Cin = feat.shape[1]
    Cout = params["w_pw"].shape[1]
    dn = ("NCHW", "OIHW", "NCHW")

    w_pw = jnp.transpose(params["w_pw"], (1, 0))[:, :, None, None]
    y = lax.conv_general_dilated(feat, w_pw, (1, 1), "VALID", dimension_numbers=dn)
    y = y + params["b_pw"][None, :, None, None]
    s1 = params["bn1_gamma"] / jnp.sqrt(params["bn1_var"] + eps)
    x1 = (y - params["bn1_mean"][None, :, None, None]) * s1[None, :, None, None] \
         + params["bn1_beta"][None, :, None, None]
    x1 = jnp.maximum(x1, 0.0)

    w_dw = params["w_dw"][:, None, :, :]
    w_sc = params["w_sc"][:, None, :, :]
    zd = lax.conv_general_dilated(x1, w_dw, (s, s), ((p, p), (p, p)),
                                  dimension_numbers=dn, feature_group_count=Cout)
    zd = zd + params["b_dw"][None, :, None, None]
    zs = lax.conv_general_dilated(feat, w_sc, (s, s), ((p, p), (p, p)),
                                  dimension_numbers=dn, feature_group_count=Cin)
    zs = zs + params["b_sc"][None, :, None, None]
    z = zd + zs
    s2 = params["bn2_gamma"] / jnp.sqrt(params["bn2_var"] + eps)
    out = (z - params["bn2_mean"][None, :, None, None]) * s2[None, :, None, None] \
          + params["bn2_beta"][None, :, None, None]
    return jnp.maximum(out, 0.0)


if __name__ == "__main__":
    N, C, H, W = 2, 4, 16, 16
    kernel_size, stride, padding = 3, 1, 1

    key = jax.random.PRNGKey(0)
    k_x, k_p = jax.random.split(key)
    x = jax.random.normal(k_x, (N, C, H, W), jnp.float32)
    params = init_params(k_p, C, C, kernel_size)

    out = residual_depth_wise(x, params, kernel_size=kernel_size,
                              stride=stride, padding=padding)
    out = jax.block_until_ready(out)

    ref = jax.block_until_ready(
        reference(x, params, kernel_size=kernel_size, stride=stride,
                  padding=padding))

    assert out.shape == ref.shape == (N, C, H, W)
    assert jnp.allclose(out, ref, atol=1e-4, rtol=1e-4), \
        f"max err {jnp.max(jnp.abs(out - ref))}"
    print("KERNEL_OK")
</pallas_src>

<mosaic_0001>
module attributes {stable_mosaic.version = 11 : i64} {
  func.func @kernel(%arg0: i32, %arg1: i32, %arg2: memref<1x4x8x16xf32, #tpu.memory_space<vmem>>, %arg3: memref<1x4x8x16xf32, #tpu.memory_space<vmem>>, %arg4: memref<1x4x8x16xf32, #tpu.memory_space<vmem>>, %arg5: memref<4x4xf32, #tpu.memory_space<smem>>, %arg6: memref<1x4xf32, #tpu.memory_space<smem>>, %arg7: memref<1x4xf32, #tpu.memory_space<smem>>, %arg8: memref<9x4xf32, #tpu.memory_space<smem>>, %arg9: memref<9x4xf32, #tpu.memory_space<smem>>, %arg10: memref<1x4xf32, #tpu.memory_space<smem>>, %arg11: memref<1x4xf32, #tpu.memory_space<smem>>, %arg12: memref<1x4x8x16xf32, #tpu.memory_space<vmem>>, %arg13: memref<4x10x18xf32, #tpu.memory_space<vmem>>) attributes {dimension_semantics = [#tpu.dimension_semantics<parallel>, #tpu.dimension_semantics<parallel>], iteration_bounds = array<i64: 2, 2>, scalar_prefetch = 0 : i64, scratch_operands = 1 : i64, tpu.core_type = #tpu.core_type<tc>, window_params = [{transform_indices = @transform_0, window_bounds = array<i64: 1, 4, 8, 16>}, {transform_indices = @transform_1, window_bounds = array<i64: 1, 4, 8, 16>}, {transform_indices = @transform_2, window_bounds = array<i64: 1, 4, 8, 16>}, {transform_indices = @transform_3, window_bounds = array<i64: 4, 4>}, {transform_indices = @transform_4, window_bounds = array<i64: 1, 4>}, {transform_indices = @transform_5, window_bounds = array<i64: 1, 4>}, {transform_indices = @transform_6, window_bounds = array<i64: 9, 4>}, {transform_indices = @transform_7, window_bounds = array<i64: 9, 4>}, {transform_indices = @transform_8, window_bounds = array<i64: 1, 4>}, {transform_indices = @transform_9, window_bounds = array<i64: 1, 4>}, {transform_indices = @transform_10, window_bounds = array<i64: 1, 4, 8, 16>}]} {
    %c8_i32 = arith.constant 8 : i32
    %0 = arith.muli %arg1, %c8_i32 : i32
    %c1_i32 = arith.constant 1 : i32
    %1 = arith.subi %0, %c1_i32 : i32
    %2 = tpu.iota {dimensions = array<i32: 0>} : vector<10x18xi32>
    %3 = vector.broadcast %1 : i32 to vector<10x18xi32>
    %4 = arith.addi %2, %3 : vector<10x18xi32>
    %5 = tpu.iota {dimensions = array<i32: 1>} : vector<10x18xi32>
    %c0_i32 = arith.constant 0 : i32
    %6 = vector.broadcast %c0_i32 : i32 to vector<10x18xi32>
    %7 = arith.cmpi sge, %4, %6 : vector<10x18xi32>
    %c16_i32 = arith.constant 16 : i32
    %8 = vector.broadcast %c16_i32 : i32 to vector<10x18xi32>
    %9 = arith.cmpi slt, %4, %8 : vector<10x18xi32>
    %10 = arith.andi %7, %9 : vector<10x18xi1>
    %c1_i32_0 = arith.constant 1 : i32
    %11 = vector.broadcast %c1_i32_0 : i32 to vector<10x18xi32>
    %12 = arith.cmpi sge, %5, %11 : vector<10x18xi32>
    %c17_i32 = arith.constant 17 : i32
    %13 = vector.broadcast %c17_i32 : i32 to vector<10x18xi32>
    %14 = arith.cmpi slt, %5, %13 : vector<10x18xi32>
    %15 = arith.andi %12, %14 : vector<10x18xi1>
    %16 = arith.andi %10, %15 : vector<10x18xi1>
    %cst = arith.constant 0.000000e+00 : f32
    %17 = vector.broadcast %cst : f32 to vector<4x10x1xf32>
    %c0 = arith.constant 0 : index
    %c0_1 = arith.constant 0 : index
    %c0_2 = arith.constant 0 : index
    %18 = vector.load %arg13[%c0, %c0_1, %c0_2] : memref<4x10x18xf32, #tpu.memory_space<vmem>>, vector<4x10x1xf32>
    tpu.vector_store %arg13[%c0, %c0_1, %c0_2], %17 {strides = array<i32>} : memref<4x10x18xf32, #tpu.memory_space<vmem>>, vector<4x10x1xf32>,
    %cst_3 = arith.constant 0.000000e+00 : f32
    %19 = vector.broadcast %cst_3 : f32 to vector<4x10x1xf32>
    %c0_4 = arith.constant 0 : index
    %c0_5 = arith.constant 0 : index
    %c17 = arith.constant 17 : index
    %20 = vector.load %arg13[%c0_4, %c0_5, %c17] : memref<4x10x18xf32, #tpu.memory_space<vmem>>, vector<4x10x1xf32>
    tpu.vector_store %arg13[%c0_4, %c0_5, %c17], %19 {strides = array<i32>} : memref<4x10x18xf32, #tpu.memory_space<vmem>>, vector<4x10x1xf32>,
    %c0_6 = arith.constant 0 : index
    %c0_7 = arith.constant 0 : index
    %c7 = arith.constant 7 : index
    %c0_8 = arith.constant 0 : index
    %21 = vector.load %arg2[%c0_6, %c0_7, %c7, %c0_8] : memref<1x4x8x16xf32, #tpu.memory_space<vmem>>, vector<1x4x1x16xf32>
    %22 = vector.shape_cast %21 : vector<1x4x1x16xf32> to vector<4x1x16xf32>
    %23 = vector.extract_strided_slice %10 {offsets = [0, 1], sizes = [1, 16], strides = [1, 1]} : vector<10x18xi1> to vector<1x16xi1>
    %24 = vector.shape_cast %23 : vector<1x16xi1> to vector<1x1x16xi1>
    %cst_9 = arith.constant 0.000000e+00 : f32
    %25 = vector.shape_cast %24 : vector<1x1x16xi1> to vector<1x1x16xi1>
    %26 = vector.broadcast %25 : vector<1x1x16xi1> to vector<4x1x16xi1>
    %27 = vector.broadcast %cst_9 : f32 to vector<4x1x16xf32>
    %28 = arith.select %26, %22, %27 : vector<4x1x16xi1>, vector<4x1x16xf32>
    %c0_10 = arith.constant 0 : index
    %c0_11 = arith.constant 0 : index
    %c1 = arith.constant 1 : index
    %29 = vector.load %arg13[%c0_10, %c0_11, %c1] : memref<4x10x18xf32, #tpu.memory_space<vmem>>, vector<4x1x16xf32>
    tpu.vector_store %arg13[%c0_10, %c0_11, %c1], %28 {strides = array<i32>} : memref<4x10x18xf32, #tpu.memory_space<vmem>>, vector<4x1x16xf32>,
    %c0_12 = arith.constant 0 : index
    %c0_13 = arith.constant 0 : index
    %c0_14 = arith.constant 0 : index
    %c0_15 = arith.constant 0 : index
    %30 = vector.load %arg3[%c0_12, %c0_13, %c0_14, %c0_15] : memref<1x4x8x16xf32, #tpu.memory_space<vmem>>, vector<1x4x8x16xf32>
    %31 = vector.shape_cast %30 : vector<1x4x8x16xf32> to vector<4x8x16xf32>
    %c0_16 = arith.constant 0 : index
    %c1_17 = arith.constant 1 : index
    %c1_18 = arith.constant 1 : index
    %32 = vector.load %arg13[%c0_16, %c1_17, %c1_18] : memref<4x10x18xf32, #tpu.memory_space<vmem>>, vector<4x8x16xf32>
    tpu.vector_store %arg13[%c0_16, %c1_17, %c1_18], %31 {strides = array<i32>} : memref<4x10x18xf32, #tpu.memory_space<vmem>>, vector<4x8x16xf32>,
    %c0_19 = arith.constant 0 : index
    %c0_20 = arith.constant 0 : index
    %c0_21 = arith.constant 0 : index
    %c0_22 = arith.constant 0 : index
    %33 = vector.load %arg4[%c0_19, %c0_20, %c0_21, %c0_22] : memref<1x4x8x16xf32, #tpu.memory_space<vmem>>, vector<1x4x1x16xf32>
    %34 = vector.shape_cast %33 : vector<1x4x1x16xf32> to vector<4x1x16xf32>
    %35 = vector.extract_strided_slice %10 {offsets = [9, 1], sizes = [1, 16], strides = [1, 1]} : vector<10x18xi1> to vector<1x16xi1>
    %36 = vector.shape_cast %35 : vector<1x16xi1> to vector<1x1x16xi1>
    %cst_23 = arith.constant 0.000000e+00 : f32
    %37 = vector.shape_cast %36 : vector<1x1x16xi1> to vector<1x1x16xi1>
    %38 = vector.broadcast %37 : vector<1x1x16xi1> to vector<4x1x16xi1>
    %39 = vector.broadcast %cst_23 : f32 to vector<4x1x16xf32>
    %40 = arith.select %38, %34, %39 : vector<4x1x16xi1>, vector<4x1x16xf32>
    %c0_24 = arith.constant 0 : index
    %c9 = arith.constant 9 : index
    %c1_25 = arith.constant 1 : index
    %41 = vector.load %arg13[%c0_24, %c9, %c1_25] : memref<4x10x18xf32, #tpu.memory_space<vmem>>, vector<4x1x16xf32>
    tpu.vector_store %arg13[%c0_24, %c9, %c1_25], %40 {strides = array<i32>} : memref<4x10x18xf32, #tpu.memory_space<vmem>>, vector<4x1x16xf32>,
    %c0_26 = arith.constant 0 : index
    %c0_27 = arith.constant 0 : index
    %c0_28 = arith.constant 0 : index
    %42 = vector.load %arg13[%c0_26, %c0_27, %c0_28] : memref<4x10x18xf32, #tpu.memory_space<vmem>>, vector<1x10x18xf32>
    %43 = vector.shape_cast %42 : vector<1x10x18xf32> to vector<10x18xf32>
    %c1_29 = arith.constant 1 : index
    %c0_30 = arith.constant 0 : index
    %c0_31 = arith.constant 0 : index
    %44 = vector.load %arg13[%c1_29, %c0_30, %c0_31] : memref<4x10x18xf32, #tpu.memory_space<vmem>>, vector<1x10x18xf32>
    %45 = vector.shape_cast %44 : vector<1x10x18xf32> to vector<10x18xf32>
    %c2 = arith.constant 2 : index
    %c0_32 = arith.constant 0 : index
    %c0_33 = arith.constant 0 : index
    %46 = vector.load %arg13[%c2, %c0_32, %c0_33] : memref<4x10x18xf32, #tpu.memory_space<vmem>>, vector<1x10x18xf32>
    %47 = vector.shape_cast %46 : vector<1x10x18xf32> to vector<10x18xf32>
    %c3 = arith.constant 3 : index
    %c0_34 = arith.constant 0 : index
    %c0_35 = arith.constant 0 : index
    %48 = vector.load %arg13[%c3, %c0_34, %c0_35] : memref<4x10x18xf32, #tpu.memory_space<vmem>>, vector<1x10x18xf32>
    %49 = vector.shape_cast %48 : vector<1x10x18xf32> to vector<10x18xf32>
    %c0_36 = arith.constant 0 : index
    %c0_37 = arith.constant 0 : index
    %50 = memref.load %arg5[%c0_36, %c0_37] : memref<4x4xf32, #tpu.memory_space<smem>>
    %51 = vector.broadcast %50 : f32 to vector<10x18xf32>
    %52 = arith.mulf %43, %51 : vector<10x18xf32>
    %c1_38 = arith.constant 1 : index
    %c0_39 = arith.constant 0 : index
    %53 = memref.load %arg5[%c1_38, %c0_39] : memref<4x4xf32, #tpu.memory_space<smem>>
    %54 = vector.broadcast %53 : f32 to vector<10x18xf32>
    %55 = arith.mulf %45, %54 : vector<10x18xf32>
    %56 = arith.addf %52, %55 : vector<10x18xf32>
    %c2_40 = arith.constant 2 : index
    %c0_41 = arith.constant 0 : index
    %57 = memref.load %arg5[%c2_40, %c0_41] : memref<4x4xf32, #tpu.memory_space<smem>>
    %58 = vector.broadcast %57 : f32 to vector<10x18xf32>
    %59 = arith.mulf %47, %58 : vector<10x18xf32>
    %60 = arith.addf %56, %59 : vector<10x18xf32>
    %c3_42 = arith.constant 3 : index
    %c0_43 = arith.constant 0 : index
    %61 = memref.load %arg5[%c3_42, %c0_43] : memref<4x4xf32, #tpu.memory_space<smem>>
    %62 = vector.broadcast %61 : f32 to vector<10x18xf32>
    %63 = arith.mulf %49, %62 : vector<10x18xf32>
    %64 = arith.addf %60, %63 : vector<10x18xf32>
    %c0_44 = arith.constant 0 : index
    %c0_45 = arith.constant 0 : index
    %65 = memref.load %arg6[%c0_44, %c0_45] : memref<1x4xf32, #tpu.memory_space<smem>>
    %66 = vector.broadcast %65 : f32 to vector<10x18xf32>
    %67 = arith.mulf %64, %66 : vector<10x18xf32>
    %c0_46 = arith.constant 0 : index
    %c0_47 = arith.constant 0 : index
    %68 = memref.load %arg7[%c0_46, %c0_47] : memref<1x4xf32, #tpu.memory_space<smem>>
    %69 = vector.broadcast %68 : f32 to vector<10x18xf32>
    %70 = arith.addf %67, %69 : vector<10x18xf32>
    %cst_48 = arith.constant 0.000000e+00 : f32
    %71 = vector.broadcast %cst_48 : f32 to vector<10x18xf32>
    %72 = arith.maximumf %70, %71 : vector<10x18xf32>
    %cst_49 = arith.constant 0.000000e+00 : f32
    %73 = vector.broadcast %cst_49 : f32 to vector<10x18xf32>
    %74 = arith.select %16, %72, %73 : vector<10x18xi1>, vector<10x18xf32>
    %cst_50 = arith.constant 0.000000e+00 : f32
    %75 = vector.broadcast %cst_50 : f32 to vector<8x16xf32>
    %76 = vector.extract_strided_slice %74 {offsets = [0, 0], sizes = [8, 18], strides = [1, 1]} : vector<10x18xf32> to vector<8x18xf32>
    %77 = vector.extract_strided_slice %43 {offsets = [0, 0], sizes = [8, 18], strides = [1, 1]} : vector<10x18xf32> to vector<8x18xf32>
    %78 = vector.extract_strided_slice %76 {offsets = [0, 0], sizes = [8, 16], strides = [1, 1]} : vector<8x18xf32> to vector<8x16xf32>
    %c0_51 = arith.constant 0 : index
    %c0_52 = arith.constant 0 : index
    %79 = memref.load %arg8[%c0_51, %c0_52] : memref<9x4xf32, #tpu.memory_space<smem>>
    %80 = vector.broadcast %79 : f32 to vector<8x16xf32>
    %81 = arith.mulf %78, %80 : vector<8x16xf32>
    %82 = arith.addf %75, %81 : vector<8x16xf32>
    %83 = vector.extract_strided_slice %77 {offsets = [0, 0], sizes = [8, 16], strides = [1, 1]} : vector<8x18xf32> to vector<8x16xf32>
    %c0_53 = arith.constant 0 : index
    %c0_54 = arith.constant 0 : index
    %84 = memref.load %arg9[%c0_53, %c0_54] : memref<9x4xf32, #tpu.memory_space<smem>>
    %85 = vector.broadcast %84 : f32 to vector<8x16xf32>
    %86 = arith.mulf %83, %85 : vector<8x16xf32>
    %87 = arith.addf %82, %86 : vector<8x16xf32>
    %88 = vector.extract_strided_slice %76 {offsets = [0, 1], sizes = [8, 16], strides = [1, 1]} : vector<8x18xf32> to vector<8x16xf32>
    %c1_55 = arith.constant 1 : index
    %c0_56 = arith.constant 0 : index
    %89 = memref.load %arg8[%c1_55, %c0_56] : memref<9x4xf32, #tpu.memory_space<smem>>
    %90 = vector.broadcast %89 : f32 to vector<8x16xf32>
    %91 = arith.mulf %88, %90 : vector<8x16xf32>
    %92 = arith.addf %87, %91 : vector<8x16xf32>
    %93 = vector.extract_strided_slice %77 {offsets = [0, 1], sizes = [8, 16], strides = [1, 1]} : vector<8x18xf32> to vector<8x16xf32>
    %c1_57 = arith.constant 1 : index
    %c0_58 = arith.constant 0 : index
    %94 = memref.load %arg9[%c1_57, %c0_58] : memref<9x4xf32, #tpu.memory_space<smem>>
    %95 = vector.broadcast %94 : f32 to vector<8x16xf32>
    %96 = arith.mulf %93, %95 : vector<8x16xf32>
    %97 = arith.addf %92, %96 : vector<8x16xf32>
    %98 = vector.extract_strided_slice %76 {offsets = [0, 2], sizes = [8, 16], strides = [1, 1]} : vector<8x18xf32> to vector<8x16xf32>
    %c2_59 = arith.constant 2 : index
    %c0_60 = arith.constant 0 : index
    %99 = memref.load %arg8[%c2_59, %c0_60] : memref<9x4xf32, #tpu.memory_space<smem>>
    %100 = vector.broadcast %99 : f32 to vector<8x16xf32>
    %101 = arith.mulf %98, %100 : vector<8x16xf32>
    %102 = arith.addf %97, %101 : vector<8x16xf32>
    %103 = vector.extract_strided_slice %77 {offsets = [0, 2], sizes = [8, 16], strides = [1, 1]} : vector<8x18xf32> to vector<8x16xf32>
    %c2_61 = arith.constant 2 : index
    %c0_62 = arith.constant 0 : index
    %104 = memref.load %arg9[%c2_61, %c0_62] : memref<9x4xf32, #tpu.memory_space<smem>>
    %105 = vector.broadcast %104 : f32 to vector<8x16xf32>
    %106 = arith.mulf %103, %105 : vector<8x16xf32>
    %107 = arith.addf %102, %106 : vector<8x16xf32>
    %108 = vector.extract_strided_slice %74 {offsets = [1, 0], sizes = [8, 18], strides = [1, 1]} : vector<10x18xf32> to vector<8x18xf32>
    %109 = vector.extract_strided_slice %43 {offsets = [1, 0], sizes = [8, 18], strides = [1, 1]} : vector<10x18xf32> to vector<8x18xf32>
    %110 = vector.extract_strided_slice %108 {offsets = [0, 0], sizes = [8, 16], strides = [1, 1]} : vector<8x18xf32> to vector<8x16xf32>
    %c3_63 = arith.constant 3 : index
    %c0_64 = arith.constant 0 : index
    %111 = memref.load %arg8[%c3_63, %c0_64] : memref<9x4xf32, #tpu.memory_space<smem>>
    %112 = vector.broadcast %111 : f32 to vector<8x16xf32>
    %113 = arith.mulf %110, %112 : vector<8x16xf32>
    %114 = arith.addf %107, %113 : vector<8x16xf32>
    %115 = vector.extract_strided_slice %109 {offsets = [0, 0], sizes = [8, 16], strides = [1, 1]} : vector<8x18xf32> to vector<8x16xf32>
    %c3_65 = arith.constant 3 : index
    %c0_66 = arith.constant 0 : index
    %116 = memref.load %arg9[%c3_65, %c0_66] : memref<9x4xf32, #tpu.memory_space<smem>>
    %117 = vector.broadcast %116 : f32 to vector<8x16xf32>
    %118 = arith.mulf %115, %117 : vector<8x16xf32>
    %119 = arith.addf %114, %118 : vector<8x16xf32>
    %120 = vector.extract_strided_slice %108 {offsets = [0, 1], sizes = [8, 16], strides = [1, 1]} : vector<8x18xf32> to vector<8x16xf32>
    %c4 = arith.constant 4 : index
    %c0_67 = arith.constant 0 : index
    %121 = memref.load %arg8[%c4, %c0_67] : memref<9x4xf32, #tpu.memory_space<smem>>
    %122 = vector.broadcast %121 : f32 to vector<8x16xf32>
    %123 = arith.mulf %120, %122 : vector<8x16xf32>
    %124 = arith.addf %119, %123 : vector<8x16xf32>
    %125 = vector.extract_strided_slice %109 {offsets = [0, 1], sizes = [8, 16], strides = [1, 1]} : vector<8x18xf32> to vector<8x16xf32>
    %c4_68 = arith.constant 4 : index
    %c0_69 = arith.constant 0 : index
    %126 = memref.load %arg9[%c4_68, %c0_69] : memref<9x4xf32, #tpu.memory_space<smem>>
    %127 = vector.broadcast %126 : f32 to vector<8x16xf32>
    %128 = arith.mulf %125, %127 : vector<8x16xf32>
    %129 = arith.addf %124, %128 : vector<8x16xf32>
    %130 = vector.extract_strided_slice %108 {offsets = [0, 2], sizes = [8, 16], strides = [1, 1]} : vector<8x18xf32> to vector<8x16xf32>
    %c5 = arith.constant 5 : index
    %c0_70 = arith.constant 0 : index
    %131 = memref.load %arg8[%c5, %c0_70] : memref<9x4xf32, #tpu.memory_space<smem>>
    %132 = vector.broadcast %131 : f32 to vector<8x16xf32>
    %133 = arith.mulf %130, %132 : vector<8x16xf32>
    %134 = arith.addf %129, %133 : vector<8x16xf32>
    %135 = vector.extract_strided_slice %109 {offsets = [0, 2], sizes = [8, 16], strides = [1, 1]} : vector<8x18xf32> to vector<8x16xf32>
    %c5_71 = arith.constant 5 : index
    %c0_72 = arith.constant 0 : index
    %136 = memref.load %arg9[%c5_71, %c0_72] : memref<9x4xf32, #tpu.memory_space<smem>>
    %137 = vector.broadcast %136 : f32 to vector<8x16xf32>
    %138 = arith.mulf %135, %137 : vector<8x16xf32>
    %139 = arith.addf %134, %138 : vector<8x16xf32>
    %140 = vector.extract_strided_slice %74 {offsets = [2, 0], sizes = [8, 18], strides = [1, 1]} : vector<10x18xf32> to vector<8x18xf32>
    %141 = vector.extract_strided_slice %43 {offsets = [2, 0], sizes = [8, 18], strides = [1, 1]} : vector<10x18xf32> to vector<8x18xf32>
    %142 = vector.extract_strided_slice %140 {offsets = [0, 0], sizes = [8, 16], strides = [1, 1]} : vector<8x18xf32> to vector<8x16xf32>
    %c6 = arith.constant 6 : index
    %c0_73 = arith.constant 0 : index
    %143 = memref.load %arg8[%c6, %c0_73] : memref<9x4xf32, #tpu.memory_space<smem>>
    %144 = vector.broadcast %143 : f32 to vector<8x16xf32>
    %145 = arith.mulf %142, %144 : vector<8x16xf32>
    %146 = arith.addf %139, %145 : vector<8x16xf32>
    %147 = vector.extract_strided_slice %141 {offsets = [0, 0], sizes = [8, 16], strides = [1, 1]} : vector<8x18xf32> to vector<8x16xf32>
    %c6_74 = arith.constant 6 : index
    %c0_75 = arith.constant 0 : index
    %148 = memref.load %arg9[%c6_74, %c0_75] : memref<9x4xf32, #tpu.memory_space<smem>>
    %149 = vector.broadcast %148 : f32 to vector<8x16xf32>
    %150 = arith.mulf %147, %149 : vector<8x16xf32>
    %151 = arith.addf %146, %150 : vector<8x16xf32>
    %152 = vector.extract_strided_slice %140 {offsets = [0, 1], sizes = [8, 16], strides = [1, 1]} : vector<8x18xf32> to vector<8x16xf32>
    %c7_76 = arith.constant 7 : index
    %c0_77 = arith.constant 0 : index
    %153 = memref.load %arg8[%c7_76, %c0_77] : memref<9x4xf32, #tpu.memory_space<smem>>
    %154 = vector.broadcast %153 : f32 to vector<8x16xf32>
    %155 = arith.mulf %152, %154 : vector<8x16xf32>
    %156 = arith.addf %151, %155 : vector<8x16xf32>
    %157 = vector.extract_strided_slice %141 {offsets = [0, 1], sizes = [8, 16], strides = [1, 1]} : vector<8x18xf32> to vector<8x16xf32>
    %c7_78 = arith.constant 7 : index
    %c0_79 = arith.constant 0 : index
    %158 = memref.load %arg9[%c7_78, %c0_79] : memref<9x4xf32, #tpu.memory_space<smem>>
    %159 = vector.broadcast %158 : f32 to vector<8x16xf32>
    %160 = arith.mulf %157, %159 : vector<8x16xf32>
    %161 = arith.addf %156, %160 : vector<8x16xf32>
    %162 = vector.extract_strided_slice %140 {offsets = [0, 2], sizes = [8, 16], strides = [1, 1]} : vector<8x18xf32> to vector<8x16xf32>
    %c8 = arith.constant 8 : index
    %c0_80 = arith.constant 0 : index
    %163 = memref.load %arg8[%c8, %c0_80] : memref<9x4xf32, #tpu.memory_space<smem>>
    %164 = vector.broadcast %163 : f32 to vector<8x16xf32>
    %165 = arith.mulf %162, %164 : vector<8x16xf32>
    %166 = arith.addf %161, %165 : vector<8x16xf32>
    %167 = vector.extract_strided_slice %141 {offsets = [0, 2], sizes = [8, 16], strides = [1, 1]} : vector<8x18xf32> to vector<8x16xf32>
    %c8_81 = arith.constant 8 : index
    %c0_82 = arith.constant 0 : index
    %168 = memref.load %arg9[%c8_81, %c0_82] : memref<9x4xf32, #tpu.memory_space<smem>>
    %169 = vector.broadcast %168 : f32 to vector<8x16xf32>
    %170 = arith.mulf %167, %169 : vector<8x16xf32>
    %171 = arith.addf %166, %170 : vector<8x16xf32>
    %c0_83 = arith.constant 0 : index
    %c0_84 = arith.constant 0 : index
    %172 = memref.load %arg10[%c0_83, %c0_84] : memref<1x4xf32, #tpu.memory_space<smem>>
    %173 = vector.broadcast %172 : f32 to vector<8x16xf32>
    %174 = arith.mulf %171, %173 : vector<8x16xf32>
    %c0_85 = arith.constant 0 : index
    %c0_86 = arith.constant 0 : index
    %175 = memref.load %arg11[%c0_85, %c0_86] : memref<1x4xf32, #tpu.memory_space<smem>>
    %176 = vector.broadcast %175 : f32 to vector<8x16xf32>
    %177 = arith.addf %174, %176 : vector<8x16xf32>
    %cst_87 = arith.constant 0.000000e+00 : f32
    %178 = vector.broadcast %cst_87 : f32 to vector<8x16xf32>
    %179 = arith.maximumf %177, %178 : vector<8x16xf32>
    %c0_88 = arith.constant 0 : index
    %c0_89 = arith.constant 0 : index
    %c0_90 = arith.constant 0 : index
    %c0_91 = arith.constant 0 : index
    %180 = vector.load %arg12[%c0_88, %c0_89, %c0_90, %c0_91] : memref<1x4x8x16xf32, #tpu.memory_space<vmem>>, vector<1x1x8x16xf32>
    %181 = vector.shape_cast %180 : vector<1x1x8x16xf32> to vector<8x16xf32>
    %182 = vector.shape_cast %179 : vector<8x16xf32> to vector<1x1x8x16xf32>
    tpu.vector_store %arg12[%c0_88, %c0_89, %c0_90, %c0_91], %182 {strides = array<i32>} : memref<1x4x8x16xf32, #tpu.memory_space<vmem>>, vector<1x1x8x16xf32>,
    %c0_92 = arith.constant 0 : index
    %c1_93 = arith.constant 1 : index
    %183 = memref.load %arg5[%c0_92, %c1_93] : memref<4x4xf32, #tpu.memory_space<smem>>
    %184 = vector.broadcast %183 : f32 to vector<10x18xf32>
    %185 = arith.mulf %43, %184 : vector<10x18xf32>
    %c1_94 = arith.constant 1 : index
    %c1_95 = arith.constant 1 : index
    %186 = memref.load %arg5[%c1_94, %c1_95] : memref<4x4xf32, #tpu.memory_space<smem>>
    %187 = vector.broadcast %186 : f32 to vector<10x18xf32>
    %188 = arith.mulf %45, %187 : vector<10x18xf32>
    %189 = arith.addf %185, %188 : vector<10x18xf32>
    %c2_96 = arith.constant 2 : index
    %c1_97 = arith.constant 1 : index
    %190 = memref.load %arg5[%c2_96, %c1_97] : memref<4x4xf32, #tpu.memory_space<smem>>
    %191 = vector.broadcast %190 : f32 to vector<10x18xf32>
    %192 = arith.mulf %47, %191 : vector<10x18xf32>
    %193 = arith.addf %189, %192 : vector<10x18xf32>
    %c3_98 = arith.constant 3 : index
    %c1_99 = arith.constant 1 : index
    %194 = memref.load %arg5[%c3_98, %c1_99] : memref<4x4xf32, #tpu.memory_space<smem>>
    %195 = vector.broadcast %194 : f32 to vector<10x18xf32>
    %196 = arith.mulf %49, %195 : vector<10x18xf32>
    %197 = arith.addf %193, %196 : vector<10x18xf32>
    %c0_100 = arith.constant 0 : index
    %c1_101 = arith.constant 1 : index
    %198 = memref.load %arg6[%c0_100, %c1_101] : memref<1x4xf32, #tpu.memory_space<smem>>
    %199 = vector.broadcast %198 : f32 to vector<10x18xf32>
    %200 = arith.mulf %197, %199 : vector<10x18xf32>
    %c0_102 = arith.constant 0 : index
    %c1_103 = arith.constant 1 : index
    %201 = memref.load %arg7[%c0_102, %c1_103] : memref<1x4xf32, #tpu.memory_space<smem>>
    %202 = vector.broadcast %201 : f32 to vector<10x18xf32>
    %203 = arith.addf %200, %202 : vector<10x18xf32>
    %cst_104 = arith.constant 0.000000e+00 : f32
    %204 = vector.broadcast %cst_104 : f32 to vector<10x18xf32>
    %205 = arith.maximumf %203, %204 : vector<10x18xf32>
    %cst_105 = arith.constant 0.000000e+00 : f32
    %206 = vector.broadcast %cst_105 : f32 to vector<10x18xf32>
    %207 = arith.select %16, %205, %206 : vector<10x18xi1>, vector<10x18xf32>
    %cst_106 = arith.constant 0.000000e+00 : f32
    %208 = vector.broadcast %cst_106 : f32 to vector<8x16xf32>
    %209 = vector.extract_strided_slice %207 {offsets = [0, 0], sizes = [8, 18], strides = [1, 1]} : vector<10x18xf32> to vector<8x18xf32>
    %210 = vector.extract_strided_slice %45 {offsets = [0, 0], sizes = [8, 18], strides = [1, 1]} : vector<10x18xf32> to vector<8x18xf32>
    %211 = vector.extract_strided_slice %209 {offsets = [0, 0], sizes = [8, 16], strides = [1, 1]} : vector<8x18xf32> to vector<8x16xf32>
    %c0_107 = arith.constant 0 : index
    %c1_108 = arith.constant 1 : index
    %212 = memref.load %arg8[%c0_107, %c1_108] : memref<9x4xf32, #tpu.memory_space<smem>>
    %213 = vector.broadcast %212 : f32 to vector<8x16xf32>
    %214 = arith.mulf %211, %213 : vector<8x16xf32>
    %215 = arith.addf %208, %214 : vector<8x16xf32>
    %216 = vector.extract_strided_slice %210 {offsets = [0, 0], sizes = [8, 16], strides = [1, 1]} : vector<8x18xf32> to vector<8x16xf32>
    %c0_109 = arith.constant 0 : index
    %c1_110 = arith.constant 1 : index
    %217 = memref.load %arg9[%c0_109, %c1_110] : memref<9x4xf32, #tpu.memory_space<smem>>
    %218 = vector.broadcast %217 : f32 to vector<8x16xf32>
    %219 = arith.mulf %216, %218 : vector<8x16xf32>
    %220 = arith.addf %215, %219 : vector<8x16xf32>
    %221 = vector.extract_strided_slice %209 {offsets = [0, 1], sizes = [8, 16], strides = [1, 1]} : vector<8x18xf32> to vector<8x16xf32>
    %c1_111 = arith.constant 1 : index
    %c1_112 = arith.constant 1 : index
    %222 = memref.load %arg8[%c1_111, %c1_112] : memref<9x4xf32, #tpu.memory_space<smem>>
    %223 = vector.broadcast %222 : f32 to vector<8x16xf32>
    %224 = arith.mulf %221, %223 : vector<8x16xf32>
    %225 = arith.addf %220, %224 : vector<8x16xf32>
    %226 = vector.extract_strided_slice %210 {offsets = [0, 1], sizes = [8, 16], strides = [1, 1]} : vector<8x18xf32> to vector<8x16xf32>
    %c1_113 = arith.constant 1 : index
    %c1_114 = arith.constant 1 : index
    %227 = memref.load %arg9[%c1_113, %c1_114] : memref<9x4xf32, #tpu.memory_space<smem>>
    %228 = vector.broadcast %227 : f32 to vector<8x16xf32>
    %229 = arith.mulf %226, %228 : vector<8x16xf32>
    %230 = arith.addf %225, %229 : vector<8x16xf32>
    %231 = vector.extract_strided_slice %209 {offsets = [0, 2], sizes = [8, 16], strides = [1, 1]} : vector<8x18xf32> to vector<8x16xf32>
    %c2_115 = arith.constant 2 : index
    %c1_116 = arith.constant 1 : index
    %232 = memref.load %arg8[%c2_115, %c1_116] : memref<9x4xf32, #tpu.memory_space<smem>>
    %233 = vector.broadcast %232 : f32 to vector<8x16xf32>
    %234 = arith.mulf %231, %233 : vector<8x16xf32>
    %235 = arith.addf %230, %234 : vector<8x16xf32>
    %236 = vector.extract_strided_slice %210 {offsets = [0, 2], sizes = [8, 16], strides = [1, 1]} : vector<8x18xf32> to vector<8x16xf32>
    %c2_117 = arith.constant 2 : index
    %c1_118 = arith.constant 1 : index
    %237 = memref.load %arg9[%c2_117, %c1_118] : memref<9x4xf32, #tpu.memory_space<smem>>
    %238 = vector.broadcast %237 : f32 to vector<8x16xf32>
    %239 = arith.mulf %236, %238 : vector<8x16xf32>
    %240 = arith.addf %235, %239 : vector<8x16xf32>
    %241 = vector.extract_strided_slice %207 {offsets = [1, 0], sizes = [8, 18], strides = [1, 1]} : vector<10x18xf32> to vector<8x18xf32>
    %242 = vector.extract_strided_slice %45 {offsets = [1, 0], sizes = [8, 18], strides = [1, 1]} : vector<10x18xf32> to vector<8x18xf32>
    %243 = vector.extract_strided_slice %241 {offsets = [0, 0], sizes = [8, 16], strides = [1, 1]} : vector<8x18xf32> to vector<8x16xf32>
    %c3_119 = arith.constant 3 : index
    %c1_120 = arith.constant 1 : index
    %244 = memref.load %arg8[%c3_119, %c1_120] : memref<9x4xf32, #tpu.memory_space<smem>>
    %245 = vector.broadcast %244 : f32 to vector<8x16xf32>
    %246 = arith.mulf %243, %245 : vector<8x16xf32>
    %247 = arith.addf %240, %246 : vector<8x16xf32>
    %248 = vector.extract_strided_slice %242 {offsets = [0, 0], sizes = [8, 16], strides = [1, 1]} : vector<8x18xf32> to vector<8x16xf32>
    %c3_121 = arith.constant 3 : index
    %c1_122 = arith.constant 1 : index
    %249 = memref.load %arg9[%c3_121, %c1_122] : memref<9x4xf32, #tpu.memory_space<smem>>
    %250 = vector.broadcast %249 : f32 to vector<8x16xf32>
    %251 = arith.mulf %248, %250 : vector<8x16xf32>
    %252 = arith.addf %247, %251 : vector<8x16xf32>
    %253 = vector.extract_strided_slice %241 {offsets = [0, 1], sizes = [8, 16], strides = [1, 1]} : vector<8x18xf32> to vector<8x16xf32>
    %c4_123 = arith.constant 4 : index
    %c1_124 = arith.constant 1 : index
    %254 = memref.load %arg8[%c4_123, %c1_124] : memref<9x4xf32, #tpu.memory_space<smem>>
    %255 = vector.broadcast %254 : f32 to vector<8x16xf32>
    %256 = arith.mulf %253, %255 : vector<8x16xf32>
    %257 = arith.addf %252, %256 : vector<8x16xf32>
    %258 = vector.extract_strided_slice %242 {offsets = [0, 1], sizes = [8, 16], strides = [1, 1]} : vector<8x18xf32> to vector<8x16xf32>
    %c4_125 = arith.constant 4 : index
    %c1_126 = arith.constant 1 : index
    %259 = memref.load %arg9[%c4_125, %c1_126] : memref<9x4xf32, #tpu.memory_space<smem>>
    %260 = vector.broadcast %259 : f32 to vector<8x16xf32>
    %261 = arith.mulf %258, %260 : vector<8x16xf32>
    %262 = arith.addf %257, %261 : vector<8x16xf32>
    %263 = vector.extract_strided_slice %241 {offsets = [0, 2], sizes = [8, 16], strides = [1, 1]} : vector<8x18xf32> to vector<8x16xf32>
    %c5_127 = arith.constant 5 : index
    %c1_128 = arith.constant 1 : index
    %264 = memref.load %arg8[%c5_127, %c1_128] : memref<9x4xf32, #tpu.memory_space<smem>>
    %265 = vector.broadcast %264 : f32 to vector<8x16xf32>
    %266 = arith.mulf %263, %265 : vector<8x16xf32>
    %267 = arith.addf %262, %266 : vector<8x16xf32>
    %268 = vector.extract_strided_slice %242 {offsets = [0, 2], sizes = [8, 16], strides = [1, 1]} : vector<8x18xf32> to vector<8x16xf32>
    %c5_129 = arith.constant 5 : index
    %c1_130 = arith.constant 1 : index
    %269 = memref.load %arg9[%c5_129, %c1_130] : memref<9x4xf32, #tpu.memory_space<smem>>
    %270 = vector.broadcast %269 : f32 to vector<8x16xf32>
    %271 = arith.mulf %268, %270 : vector<8x16xf32>
    %272 = arith.addf %267, %271 : vector<8x16xf32>
    %273 = vector.extract_strided_slice %207 {offsets = [2, 0], sizes = [8, 18], strides = [1, 1]} : vector<10x18xf32> to vector<8x18xf32>
    %274 = vector.extract_strided_slice %45 {offsets = [2, 0], sizes = [8, 18], strides = [1, 1]} : vector<10x18xf32> to vector<8x18xf32>
    %275 = vector.extract_strided_slice %273 {offsets = [0, 0], sizes = [8, 16], strides = [1, 1]} : vector<8x18xf32> to vector<8x16xf32>
    %c6_131 = arith.constant 6 : index
    %c1_132 = arith.constant 1 : index
    %276 = memref.load %arg8[%c6_131, %c1_132] : memref<9x4xf32, #tpu.memory_space<smem>>
    %277 = vector.broadcast %276 : f32 to vector<8x16xf32>
    %278 = arith.mulf %275, %277 : vector<8x16xf32>
    %279 = arith.addf %272, %278 : vector<8x16xf32>
    %280 = vector.extract_strided_slice %274 {offsets = [0, 0], sizes = [8, 16], strides = [1, 1]} : vector<8x18xf32> to vector<8x16xf32>
    %c6_133 = arith.constant 6 : index
    %c1_134 = arith.constant 1 : index
    %281 = memref.load %arg9[%c6_133, %c1_134] : memref<9x4xf32, #tpu.memory_space<smem>>
    %282 = vector.broadcast %281 : f32 to vector<8x16xf32>
    %283 = arith.mulf %280, %282 : vector<8x16xf32>
    %284 = arith.addf %279, %283 : vector<8x16xf32>
    %285 = vector.extract_strided_slice %273 {offsets = [0, 1], sizes = [8, 16], strides = [1, 1]} : vector<8x18xf32> to vector<8x16xf32>
    %c7_135 = arith.constant 7 : index
    %c1_136 = arith.constant 1 : index
    %286 = memref.load %arg8[%c7_135, %c1_136] : memref<9x4xf32, #tpu.memory_space<smem>>
    %287 = vector.broadcast %286 : f32 to vector<8x16xf32>
    %288 = arith.mulf %285, %287 : vector<8x16xf32>
    %289 = arith.addf %284, %288 : vector<8x16xf32>
    %290 = vector.extract_strided_slice %274 {offsets = [0, 1], sizes = [8, 16], strides = [1, 1]} : vector<8x18xf32> to vector<8x16xf32>
    %c7_137 = arith.constant 7 : index
    %c1_138 = arith.constant 1 : index
    %291 = memref.load %arg9[%c7_137, %c1_138] : memref<9x4xf32, #tpu.memory_space<smem>>
    %292 = vector.broadcast %291 : f32 to vector<8x16xf32>
    %293 = arith.mulf %290, %292 : vector<8x16xf32>
    %294 = arith.addf %289, %293 : vector<8x16xf32>
    %295 = vector.extract_strided_slice %273 {offsets = [0, 2], sizes = [8, 16], strides = [1, 1]} : vector<8x18xf32> to vector<8x16xf32>
    %c8_139 = arith.constant 8 : index
    %c1_140 = arith.constant 1 : index
    %296 = memref.load %arg8[%c8_139, %c1_140] : memref<9x4xf32, #tpu.memory_space<smem>>
    %297 = vector.broadcast %296 : f32 to vector<8x16xf32>
    %298 = arith.mulf %295, %297 : vector<8x16xf32>
    %299 = arith.addf %294, %298 : vector<8x16xf32>
    %300 = vector.extract_strided_slice %274 {offsets = [0, 2], sizes = [8, 16], strides = [1, 1]} : vector<8x18xf32> to vector<8x16xf32>
    %c8_141 = arith.constant 8 : index
    %c1_142 = arith.constant 1 : index
    %301 = memref.load %arg9[%c8_141, %c1_142] : memref<9x4xf32, #tpu.memory_space<smem>>
    %302 = vector.broadcast %301 : f32 to vector<8x16xf32>
    %303 = arith.mulf %300, %302 : vector<8x16xf32>
    %304 = arith.addf %299, %303 : vector<8x16xf32>
    %c0_143 = arith.constant 0 : index
    %c1_144 = arith.constant 1 : index
    %305 = memref.load %arg10[%c0_143, %c1_144] : memref<1x4xf32, #tpu.memory_space<smem>>
    %306 = vector.broadcast %305 : f32 to vector<8x16xf32>
    %307 = arith.mulf %304, %306 : vector<8x16xf32>
    %c0_145 = arith.constant 0 : index
    %c1_146 = arith.constant 1 : index
    %308 = memref.load %arg11[%c0_145, %c1_146] : memref<1x4xf32, #tpu.memory_space<smem>>
    %309 = vector.broadcast %308 : f32 to vector<8x16xf32>
    %310 = arith.addf %307, %309 : vector<8x16xf32>
    %cst_147 = arith.constant 0.000000e+00 : f32
    %311 = vector.broadcast %cst_147 : f32 to vector<8x16xf32>
    %312 = arith.maximumf %310, %311 : vector<8x16xf32>
    %c0_148 = arith.constant 0 : index
    %c1_149 = arith.constant 1 : index
    %c0_150 = arith.constant 0 : index
    %c0_151 = arith.constant 0 : index
    %313 = vector.load %arg12[%c0_148, %c1_149, %c0_150, %c0_151] : memref<1x4x8x16xf32, #tpu.memory_space<vmem>>, vector<1x1x8x16xf32>
    %314 = vector.shape_cast %313 : vector<1x1x8x16xf32> to vector<8x16xf32>
    %315 = vector.shape_cast %312 : vector<8x16xf32> to vector<1x1x8x16xf32>
    tpu.vector_store %arg12[%c0_148, %c1_149, %c0_150, %c0_151], %315 {strides = array<i32>} : memref<1x4x8x16xf32, #tpu.memory_space<vmem>>, vector<1x1x8x16xf32>,
    %c0_152 = arith.constant 0 : index
    %c2_153 = arith.constant 2 : index
    %316 = memref.load %arg5[%c0_152, %c2_153] : memref<4x4xf32, #tpu.memory_space<smem>>
    %317 = vector.broadcast %316 : f32 to vector<10x18xf32>
    %318 = arith.mulf %43, %317 : vector<10x18xf32>
    %c1_154 = arith.constant 1 : index
    %c2_155 = arith.constant 2 : index
    %319 = memref.load %arg5[%c1_154, %c2_155] : memref<4x4xf32, #tpu.memory_space<smem>>
    %320 = vector.broadcast %319 : f32 to vector<10x18xf32>
    %321 = arith.mulf %45, %320 : vector<10x18xf32>
    %322 = arith.addf %318, %321 : vector<10x18xf32>
    %c2_156 = arith.constant 2 : index
    %c2_157 = arith.constant 2 : index
    %323 = memref.load %arg5[%c2_156, %c2_157] : memref<4x4xf32, #tpu.memory_space<smem>>
    %324 = vector.broadcast %323 : f32 to vector<10x18xf32>
    %325 = arith.mulf %47, %324 : vector<10x18xf32>
    %326 = arith.addf %322, %325 : vector<10x18xf32>
    %c3_158 = arith.constant 3 : index
    %c2_159 = arith.constant 2 : index
    %327 = memref.load %arg5[%c3_158, %c2_159] : memref<4x4xf32, #tpu.memory_space<smem>>
    %328 = vector.broadcast %327 : f32 to vector<10x18xf32>
    %329 = arith.mulf %49, %328 : vector<10x18xf32>
    %330 = arith.addf %326, %329 : vector<10x18xf32>
    %c0_160 = arith.constant 0 : index
    %c2_161 = arith.constant 2 : index
    %331 = memref.load %arg6[%c0_160, %c2_161] : memref<1x4xf32, #tpu.memory_space<smem>>
    %332 = vector.broadcast %331 : f32 to vector<10x18xf32>
    %333 = arith.mulf %330, %332 : vector<10x18xf32>
    %c0_162 = arith.constant 0 : index
    %c2_163 = arith.constant 2 : index
    %334 = memref.load %arg7[%c0_162, %c2_163] : memref<1x4xf32, #tpu.memory_space<smem>>
    %335 = vector.broadcast %334 : f32 to vector<10x18xf32>
    %336 = arith.addf %333, %335 : vector<10x18xf32>
    %cst_164 = arith.constant 0.000000e+00 : f32
    %337 = vector.broadcast %cst_164 : f32 to vector<10x18xf32>
    %338 = arith.maximumf %336, %337 : vector<10x18xf32>
    %cst_165 = arith.constant 0.000000e+00 : f32
    %339 = vector.broadcast %cst_165 : f32 to vector<10x18xf32>
    %340 = arith.select %16, %338, %339 : vector<10x18xi1>, vector<10x18xf32>
    %cst_166 = arith.constant 0.000000e+00 : f32
    %341 = vector.broadcast %cst_166 : f32 to vector<8x16xf32>
    %342 = vector.extract_strided_slice %340 {offsets = [0, 0], sizes = [8, 18], strides = [1, 1]} : vector<10x18xf32> to vector<8x18xf32>
    %343 = vector.extract_strided_slice %47 {offsets = [0, 0], sizes = [8, 18], strides = [1, 1]} : vector<10x18xf32> to vector<8x18xf32>
    %344 = vector.extract_strided_slice %342 {offsets = [0, 0], sizes = [8, 16], strides = [1, 1]} : vector<8x18xf32> to vector<8x16xf32>
    %c0_167 = arith.constant 0 : index
    %c2_168 = arith.constant 2 : index
    %345 = memref.load %arg8[%c0_167, %c2_168] : memref<9x4xf32, #tpu.memory_space<smem>>
    %346 = vector.broadcast %345 : f32 to vector<8x16xf32>
    %347 = arith.mulf %344, %346 : vector<8x16xf32>
    %348 = arith.addf %341, %347 : vector<8x16xf32>
    %349 = vector.extract_strided_slice %343 {offsets = [0, 0], sizes = [8, 16], strides = [1, 1]} : vector<8x18xf32> to vector<8x16xf32>
    %c0_169 = arith.constant 0 : index
    %c2_170 = arith.constant 2 : index
    %350 = memref.load %arg9[%c0_169, %c2_170] : memref<9x4xf32, #tpu.memory_space<smem>>
    %351 = vector.broadcast %350 : f32 to vector<8x16xf32>
    %352 = arith.mulf %349, %351 : vector<8x16xf32>
    %353 = arith.addf %348, %352 : vector<8x16xf32>
    %354 = vector.extract_strided_slice %342 {offsets = [0, 1], sizes = [8, 16], strides = [1, 1]} : vector<8x18xf32> to vector<8x16xf32>
    %c1_171 = arith.constant 1 : index
    %c2_172 = arith.constant 2 : index
    %355 = memref.load %arg8[%c1_171, %c2_172] : memref<9x4xf32, #tpu.memory_space<smem>>
    %356 = vector.broadcast %355 : f32 to vector<8x16xf32>
    %357 = arith.mulf %354, %356 : vector<8x16xf32>
    %358 = arith.addf %353, %357 : vector<8x16xf32>
    %359 = vector.extract_strided_slice %343 {offsets = [0, 1], sizes = [8, 16], strides = [1, 1]} : vector<8x18xf32> to vector<8x16xf32>
    %c1_173 = arith.constant 1 : index
    %c2_174 = arith.constant 2 : index
    %360 = memref.load %arg9[%c1_173, %c2_174] : memref<9x4xf32, #tpu.memory_space<smem>>
    %361 = vector.broadcast %360 : f32 to vector<8x16xf32>
    %362 = arith.mulf %359, %361 : vector<8x16xf32>
    %363 = arith.addf %358, %362 : vector<8x16xf32>
    %364 = vector.extract_strided_slice %342 {offsets = [0, 2], sizes = [8, 16], strides = [1, 1]} : vector<8x18xf32> to vector<8x16xf32>
    %c2_175 = arith.constant 2 : index
    %c2_176 = arith.constant 2 : index
    %365 = memref.load %arg8[%c2_175, %c2_176] : memref<9x4xf32, #tpu.memory_space<smem>>
    %366 = vector.broadcast %365 : f32 to vector<8x16xf32>
    %367 = arith.mulf %364, %366 : vector<8x16xf32>
    %368 = arith.addf %363, %367 : vector<8x16xf32>
    %369 = vector.extract_strided_slice %343 {offsets = [0, 2], sizes = [8, 16], strides = [1, 1]} : vector<8x18xf32> to vector<8x16xf32>
    %c2_177 = arith.constant 2 : index
    %c2_178 = arith.constant 2 : index
    %370 = memref.load %arg9[%c2_177, %c2_178] : memref<9x4xf32, #tpu.memory_space<smem>>
    %371 = vector.broadcast %370 : f32 to vector<8x16xf32>
    %372 = arith.mulf %369, %371 : vector<8x16xf32>
    %373 = arith.addf %368, %372 : vector<8x16xf32>
    %374 = vector.extract_strided_slice %340 {offsets = [1, 0], sizes = [8, 18], strides = [1, 1]} : vector<10x18xf32> to vector<8x18xf32>
    %375 = vector.extract_strided_slice %47 {offsets = [1, 0], sizes = [8, 18], strides = [1, 1]} : vector<10x18xf32> to vector<8x18xf32>
    %376 = vector.extract_strided_slice %374 {offsets = [0, 0], sizes = [8, 16], strides = [1, 1]} : vector<8x18xf32> to vector<8x16xf32>
    %c3_179 = arith.constant 3 : index
    %c2_180 = arith.constant 2 : index
    %377 = memref.load %arg8[%c3_179, %c2_180] : memref<9x4xf32, #tpu.memory_space<smem>>
    %378 = vector.broadcast %377 : f32 to vector<8x16xf32>
    %379 = arith.mulf %376, %378 : vector<8x16xf32>
    %380 = arith.addf %373, %379 : vector<8x16xf32>
    %381 = vector.extract_strided_slice %375 {offsets = [0, 0], sizes = [8, 16], strides = [1, 1]} : vector<8x18xf32> to vector<8x16xf32>
    %c3_181 = arith.constant 3 : index
    %c2_182 = arith.constant 2 : index
    %382 = memref.load %arg9[%c3_181, %c2_182] : memref<9x4xf32, #tpu.memory_space<smem>>
    %383 = vector.broadcast %382 : f32 to vector<8x16xf32>
    %384 = arith.mulf %381, %383 : vector<8x16xf32>
    %385 = arith.addf %380, %384 : vector<8x16xf32>
    %386 = vector.extract_strided_slice %374 {offsets = [0, 1], sizes = [8, 16], strides = [1, 1]} : vector<8x18xf32> to vector<8x16xf32>
    %c4_183 = arith.constant 4 : index
    %c2_184 = arith.constant 2 : index
    %387 = memref.load %arg8[%c4_183, %c2_184] : memref<9x4xf32, #tpu.memory_space<smem>>
    %388 = vector.broadcast %387 : f32 to vector<8x16xf32>
    %389 = arith.mulf %386, %388 : vector<8x16xf32>
    %390 = arith.addf %385, %389 : vector<8x16xf32>
    %391 = vector.extract_strided_slice %375 {offsets = [0, 1], sizes = [8, 16], strides = [1, 1]} : vector<8x18xf32> to vector<8x16xf32>
    %c4_185 = arith.constant 4 : index
    %c2_186 = arith.constant 2 : index
    %392 = memref.load %arg9[%c4_185, %c2_186] : memref<9x4xf32, #tpu.memory_space<smem>>
    %393 = vector.broadcast %392 : f32 to vector<8x16xf32>
    %394 = arith.mulf %391, %393 : vector<8x16xf32>
    %395 = arith.addf %390, %394 : vector<8x16xf32>
    %396 = vector.extract_strided_slice %374 {offsets = [0, 2], sizes = [8, 16], strides = [1, 1]} : vector<8x18xf32> to vector<8x16xf32>
    %c5_187 = arith.constant 5 : index
    %c2_188 = arith.constant 2 : index
    %397 = memref.load %arg8[%c5_187, %c2_188] : memref<9x4xf32, #tpu.memory_space<smem>>
    %398 = vector.broadcast %397 : f32 to vector<8x16xf32>
    %399 = arith.mulf %396, %398 : vector<8x16xf32>
    %400 = arith.addf %395, %399 : vector<8x16xf32>
    %401 = vector.extract_strided_slice %375 {offsets = [0, 2], sizes = [8, 16], strides = [1, 1]} : vector<8x18xf32> to vector<8x16xf32>
    %c5_189 = arith.constant 5 : index
    %c2_190 = arith.constant 2 : index
    %402 = memref.load %arg9[%c5_189, %c2_190] : memref<9x4xf32, #tpu.memory_space<smem>>
    %403 = vector.broadcast %402 : f32 to vector<8x16xf32>
    %404 = arith.mulf %401, %403 : vector<8x16xf32>
    %405 = arith.addf %400, %404 : vector<8x16xf32>
    %406 = vector.extract_strided_slice %340 {offsets = [2, 0], sizes = [8, 18], strides = [1, 1]} : vector<10x18xf32> to vector<8x18xf32>
    %407 = vector.extract_strided_slice %47 {offsets = [2, 0], sizes = [8, 18], strides = [1, 1]} : vector<10x18xf32> to vector<8x18xf32>
    %408 = vector.extract_strided_slice %406 {offsets = [0, 0], sizes = [8, 16], strides = [1, 1]} : vector<8x18xf32> to vector<8x16xf32>
    %c6_191 = arith.constant 6 : index
    %c2_192 = arith.constant 2 : index
    %409 = memref.load %arg8[%c6_191, %c2_192] : memref<9x4xf32, #tpu.memory_space<smem>>
    %410 = vector.broadcast %409 : f32 to vector<8x16xf32>
    %411 = arith.mulf %408, %410 : vector<8x16xf32>
    %412 = arith.addf %405, %411 : vector<8x16xf32>
    %413 = vector.extract_strided_slice %407 {offsets = [0, 0], sizes = [8, 16], strides = [1, 1]} : vector<8x18xf32> to vector<8x16xf32>
    %c6_193 = arith.constant 6 : index
    %c2_194 = arith.constant 2 : index
    %414 = memref.load %arg9[%c6_193, %c2_194] : memref<9x4xf32, #tpu.memory_space<smem>>
    %415 = vector.broadcast %414 : f32 to vector<8x16xf32>
    %416 = arith.mulf %413, %415 : vector<8x16xf32>
    %417 = arith.addf %412, %416 : vector<8x16xf32>
    %418 = vector.extract_strided_slice %406 {offsets = [0, 1], sizes = [8, 16], strides = [1, 1]} : vector<8x18xf32> to vector<8x16xf32>
    %c7_195 = arith.constant 7 : index
    %c2_196 = arith.constant 2 : index
    %419 = memref.load %arg8[%c7_195, %c2_196] : memref<9x4xf32, #tpu.memory_space<smem>>
    %420 = vector.broadcast %419 : f32 to vector<8x16xf32>
    %421 = arith.mulf %418, %420 : vector<8x16xf32>
    %422 = arith.addf %417, %421 : vector<8x16xf32>
    %423 = vector.extract_strided_slice %407 {offsets = [0, 1], sizes = [8, 16], strides = [1, 1]} : vector<8x18xf32> to vector<8x16xf32>
    %c7_197 = arith.constant 7 : index
    %c2_198 = arith.constant 2 : index
    %424 = memref.load %arg9[%c7_197, %c2_198] : memref<9x4xf32, #tpu.memory_space<smem>>
    %425 = vector.broadcast %424 : f32 to vector<8x16xf32>
    %426 = arith.mulf %423, %425 : vector<8x16xf32>
    %427 = arith.addf %422, %426 : vector<8x16xf32>
    %428 = vector.extract_strided_slice %406 {offsets = [0, 2], sizes = [8, 16], strides = [1, 1]} : vector<8x18xf32> to vector<8x16xf32>
    %c8_199 = arith.constant 8 : index
    %c2_200 = arith.constant 2 : index
    %429 = memref.load %arg8[%c8_199, %c2_200] : memref<9x4xf32, #tpu.memory_space<smem>>
    %430 = vector.broadcast %429 : f32 to vector<8x16xf32>
    %431 = arith.mulf %428, %430 : vector<8x16xf32>
    %432 = arith.addf %427, %431 : vector<8x16xf32>
    %433 = vector.extract_strided_slice %407 {offsets = [0, 2], sizes = [8, 16], strides = [1, 1]} : vector<8x18xf32> to vector<8x16xf32>
    %c8_201 = arith.constant 8 : index
    %c2_202 = arith.constant 2 : index
    %434 = memref.load %arg9[%c8_201, %c2_202] : memref<9x4xf32, #tpu.memory_space<smem>>
    %435 = vector.broadcast %434 : f32 to vector<8x16xf32>
    %436 = arith.mulf %433, %435 : vector<8x16xf32>
    %437 = arith.addf %432, %436 : vector<8x16xf32>
    %c0_203 = arith.constant 0 : index
    %c2_204 = arith.constant 2 : index
    %438 = memref.load %arg10[%c0_203, %c2_204] : memref<1x4xf32, #tpu.memory_space<smem>>
    %439 = vector.broadcast %438 : f32 to vector<8x16xf32>
    %440 = arith.mulf %437, %439 : vector<8x16xf32>
    %c0_205 = arith.constant 0 : index
    %c2_206 = arith.constant 2 : index
    %441 = memref.load %arg11[%c0_205, %c2_206] : memref<1x4xf32, #tpu.memory_space<smem>>
    %442 = vector.broadcast %441 : f32 to vector<8x16xf32>
    %443 = arith.addf %440, %442 : vector<8x16xf32>
    %cst_207 = arith.constant 0.000000e+00 : f32
    %444 = vector.broadcast %cst_207 : f32 to vector<8x16xf32>
    %445 = arith.maximumf %443, %444 : vector<8x16xf32>
    %c0_208 = arith.constant 0 : index
    %c2_209 = arith.constant 2 : index
    %c0_210 = arith.constant 0 : index
    %c0_211 = arith.constant 0 : index
    %446 = vector.load %arg12[%c0_208, %c2_209, %c0_210, %c0_211] : memref<1x4x8x16xf32, #tpu.memory_space<vmem>>, vector<1x1x8x16xf32>
    %447 = vector.shape_cast %446 : vector<1x1x8x16xf32> to vector<8x16xf32>
    %448 = vector.shape_cast %445 : vector<8x16xf32> to vector<1x1x8x16xf32>
    tpu.vector_store %arg12[%c0_208, %c2_209, %c0_210, %c0_211], %448 {strides = array<i32>} : memref<1x4x8x16xf32, #tpu.memory_space<vmem>>, vector<1x1x8x16xf32>,
    %c0_212 = arith.constant 0 : index
    %c3_213 = arith.constant 3 : index
    %449 = memref.load %arg5[%c0_212, %c3_213] : memref<4x4xf32, #tpu.memory_space<smem>>
    %450 = vector.broadcast %449 : f32 to vector<10x18xf32>
    %451 = arith.mulf %43, %450 : vector<10x18xf32>
    %c1_214 = arith.constant 1 : index
    %c3_215 = arith.constant 3 : index
    %452 = memref.load %arg5[%c1_214, %c3_215] : memref<4x4xf32, #tpu.memory_space<smem>>
    %453 = vector.broadcast %452 : f32 to vector<10x18xf32>
    %454 = arith.mulf %45, %453 : vector<10x18xf32>
    %455 = arith.addf %451, %454 : vector<10x18xf32>
    %c2_216 = arith.constant 2 : index
    %c3_217 = arith.constant 3 : index
    %456 = memref.load %arg5[%c2_216, %c3_217] : memref<4x4xf32, #tpu.memory_space<smem>>
    %457 = vector.broadcast %456 : f32 to vector<10x18xf32>
    %458 = arith.mulf %47, %457 : vector<10x18xf32>
    %459 = arith.addf %455, %458 : vector<10x18xf32>
    %c3_218 = arith.constant 3 : index
    %c3_219 = arith.constant 3 : index
    %460 = memref.load %arg5[%c3_218, %c3_219] : memref<4x4xf32, #tpu.memory_space<smem>>
    %461 = vector.broadcast %460 : f32 to vector<10x18xf32>
    %462 = arith.mulf %49, %461 : vector<10x18xf32>
    %463 = arith.addf %459, %462 : vector<10x18xf32>
    %c0_220 = arith.constant 0 : index
    %c3_221 = arith.constant 3 : index
    %464 = memref.load %arg6[%c0_220, %c3_221] : memref<1x4xf32, #tpu.memory_space<smem>>
    %465 = vector.broadcast %464 : f32 to vector<10x18xf32>
    %466 = arith.mulf %463, %465 : vector<10x18xf32>
    %c0_222 = arith.constant 0 : index
    %c3_223 = arith.constant 3 : index
    %467 = memref.load %arg7[%c0_222, %c3_223] : memref<1x4xf32, #tpu.memory_space<smem>>
    %468 = vector.broadcast %467 : f32 to vector<10x18xf32>
    %469 = arith.addf %466, %468 : vector<10x18xf32>
    %cst_224 = arith.constant 0.000000e+00 : f32
    %470 = vector.broadcast %cst_224 : f32 to vector<10x18xf32>
    %471 = arith.maximumf %469, %470 : vector<10x18xf32>
    %cst_225 = arith.constant 0.000000e+00 : f32
    %472 = vector.broadcast %cst_225 : f32 to vector<10x18xf32>
    %473 = arith.select %16, %471, %472 : vector<10x18xi1>, vector<10x18xf32>
    %cst_226 = arith.constant 0.000000e+00 : f32
    %474 = vector.broadcast %cst_226 : f32 to vector<8x16xf32>
    %475 = vector.extract_strided_slice %473 {offsets = [0, 0], sizes = [8, 18], strides = [1, 1]} : vector<10x18xf32> to vector<8x18xf32>
    %476 = vector.extract_strided_slice %49 {offsets = [0, 0], sizes = [8, 18], strides = [1, 1]} : vector<10x18xf32> to vector<8x18xf32>
    %477 = vector.extract_strided_slice %475 {offsets = [0, 0], sizes = [8, 16], strides = [1, 1]} : vector<8x18xf32> to vector<8x16xf32>
    %c0_227 = arith.constant 0 : index
    %c3_228 = arith.constant 3 : index
    %478 = memref.load %arg8[%c0_227, %c3_228] : memref<9x4xf32, #tpu.memory_space<smem>>
    %479 = vector.broadcast %478 : f32 to vector<8x16xf32>
    %480 = arith.mulf %477, %479 : vector<8x16xf32>
    %481 = arith.addf %474, %480 : vector<8x16xf32>
    %482 = vector.extract_strided_slice %476 {offsets = [0, 0], sizes = [8, 16], strides = [1, 1]} : vector<8x18xf32> to vector<8x16xf32>
    %c0_229 = arith.constant 0 : index
    %c3_230 = arith.constant 3 : index
    %483 = memref.load %arg9[%c0_229, %c3_230] : memref<9x4xf32, #tpu.memory_space<smem>>
    %484 = vector.broadcast %483 : f32 to vector<8x16xf32>
    %485 = arith.mulf %482, %484 : vector<8x16xf32>
    %486 = arith.addf %481, %485 : vector<8x16xf32>
    %487 = vector.extract_strided_slice %475 {offsets = [0, 1], sizes = [8, 16], strides = [1, 1]} : vector<8x18xf32> to vector<8x16xf32>
    %c1_231 = arith.constant 1 : index
    %c3_232 = arith.constant 3 : index
    %488 = memref.load %arg8[%c1_231, %c3_232] : memref<9x4xf32, #tpu.memory_space<smem>>
    %489 = vector.broadcast %488 : f32 to vector<8x16xf32>
    %490 = arith.mulf %487, %489 : vector<8x16xf32>
    %491 = arith.addf %486, %490 : vector<8x16xf32>
    %492 = vector.extract_strided_slice %476 {offsets = [0, 1], sizes = [8, 16], strides = [1, 1]} : vector<8x18xf32> to vector<8x16xf32>
    %c1_233 = arith.constant 1 : index
    %c3_234 = arith.constant 3 : index
    %493 = memref.load %arg9[%c1_233, %c3_234] : memref<9x4xf32, #tpu.memory_space<smem>>
    %494 = vector.broadcast %493 : f32 to vector<8x16xf32>
    %495 = arith.mulf %492, %494 : vector<8x16xf32>
    %496 = arith.addf %491, %495 : vector<8x16xf32>
    %497 = vector.extract_strided_slice %475 {offsets = [0, 2], sizes = [8, 16], strides = [1, 1]} : vector<8x18xf32> to vector<8x16xf32>
    %c2_235 = arith.constant 2 : index
    %c3_236 = arith.constant 3 : index
    %498 = memref.load %arg8[%c2_235, %c3_236] : memref<9x4xf32, #tpu.memory_space<smem>>
    %499 = vector.broadcast %498 : f32 to vector<8x16xf32>
    %500 = arith.mulf %497, %499 : vector<8x16xf32>
    %501 = arith.addf %496, %500 : vector<8x16xf32>
    %502 = vector.extract_strided_slice %476 {offsets = [0, 2], sizes = [8, 16], strides = [1, 1]} : vector<8x18xf32> to vector<8x16xf32>
    %c2_237 = arith.constant 2 : index
    %c3_238 = arith.constant 3 : index
    %503 = memref.load %arg9[%c2_237, %c3_238] : memref<9x4xf32, #tpu.memory_space<smem>>
    %504 = vector.broadcast %503 : f32 to vector<8x16xf32>
    %505 = arith.mulf %502, %504 : vector<8x16xf32>
    %506 = arith.addf %501, %505 : vector<8x16xf32>
    %507 = vector.extract_strided_slice %473 {offsets = [1, 0], sizes = [8, 18], strides = [1, 1]} : vector<10x18xf32> to vector<8x18xf32>
    %508 = vector.extract_strided_slice %49 {offsets = [1, 0], sizes = [8, 18], strides = [1, 1]} : vector<10x18xf32> to vector<8x18xf32>
    %509 = vector.extract_strided_slice %507 {offsets = [0, 0], sizes = [8, 16], strides = [1, 1]} : vector<8x18xf32> to vector<8x16xf32>
    %c3_239 = arith.constant 3 : index
    %c3_240 = arith.constant 3 : index
    %510 = memref.load %arg8[%c3_239, %c3_240] : memref<9x4xf32, #tpu.memory_space<smem>>
    %511 = vector.broadcast %510 : f32 to vector<8x16xf32>
    %512 = arith.mulf %509, %511 : vector<8x16xf32>
    %513 = arith.addf %506, %512 : vector<8x16xf32>
    %514 = vector.extract_strided_slice %508 {offsets = [0, 0], sizes = [8, 16], strides = [1, 1]} : vector<8x18xf32> to vector<8x16xf32>
    %c3_241 = arith.constant 3 : index
    %c3_242 = arith.constant 3 : index
    %515 = memref.load %arg9[%c3_241, %c3_242] : memref<9x4xf32, #tpu.memory_space<smem>>
    %516 = vector.broadcast %515 : f32 to vector<8x16xf32>
    %517 = arith.mulf %514, %516 : vector<8x16xf32>
    %518 = arith.addf %513, %517 : vector<8x16xf32>
    %519 = vector.extract_strided_slice %507 {offsets = [0, 1], sizes = [8, 16], strides = [1, 1]} : vector<8x18xf32> to vector<8x16xf32>
    %c4_243 = arith.constant 4 : index
    %c3_244 = arith.constant 3 : index
    %520 = memref.load %arg8[%c4_243, %c3_244] : memref<9x4xf32, #tpu.memory_space<smem>>
    %521 = vector.broadcast %520 : f32 to vector<8x16xf32>
    %522 = arith.mulf %519, %521 : vector<8x16xf32>
    %523 = arith.addf %518, %522 : vector<8x16xf32>
    %524 = vector.extract_strided_slice %508 {offsets = [0, 1], sizes = [8, 16], strides = [1, 1]} : vector<8x18xf32> to vector<8x16xf32>
    %c4_245 = arith.constant 4 : index
    %c3_246 = arith.constant 3 : index
    %525 = memref.load %arg9[%c4_245, %c3_246] : memref<9x4xf32, #tpu.memory_space<smem>>
    %526 = vector.broadcast %525 : f32 to vector<8x16xf32>
    %527 = arith.mulf %524, %526 : vector<8x16xf32>
    %528 = arith.addf %523, %527 : vector<8x16xf32>
    %529 = vector.extract_strided_slice %507 {offsets = [0, 2], sizes = [8, 16], strides = [1, 1]} : vector<8x18xf32> to vector<8x16xf32>
    %c5_247 = arith.constant 5 : index
    %c3_248 = arith.constant 3 : index
    %530 = memref.load %arg8[%c5_247, %c3_248] : memref<9x4xf32, #tpu.memory_space<smem>>
    %531 = vector.broadcast %530 : f32 to vector<8x16xf32>
    %532 = arith.mulf %529, %531 : vector<8x16xf32>
    %533 = arith.addf %528, %532 : vector<8x16xf32>
    %534 = vector.extract_strided_slice %508 {offsets = [0, 2], sizes = [8, 16], strides = [1, 1]} : vector<8x18xf32> to vector<8x16xf32>
    %c5_249 = arith.constant 5 : index
    %c3_250 = arith.constant 3 : index
    %535 = memref.load %arg9[%c5_249, %c3_250] : memref<9x4xf32, #tpu.memory_space<smem>>
    %536 = vector.broadcast %535 : f32 to vector<8x16xf32>
    %537 = arith.mulf %534, %536 : vector<8x16xf32>
    %538 = arith.addf %533, %537 : vector<8x16xf32>
    %539 = vector.extract_strided_slice %473 {offsets = [2, 0], sizes = [8, 18], strides = [1, 1]} : vector<10x18xf32> to vector<8x18xf32>
    %540 = vector.extract_strided_slice %49 {offsets = [2, 0], sizes = [8, 18], strides = [1, 1]} : vector<10x18xf32> to vector<8x18xf32>
    %541 = vector.extract_strided_slice %539 {offsets = [0, 0], sizes = [8, 16], strides = [1, 1]} : vector<8x18xf32> to vector<8x16xf32>
    %c6_251 = arith.constant 6 : index
    %c3_252 = arith.constant 3 : index
    %542 = memref.load %arg8[%c6_251, %c3_252] : memref<9x4xf32, #tpu.memory_space<smem>>
    %543 = vector.broadcast %542 : f32 to vector<8x16xf32>
    %544 = arith.mulf %541, %543 : vector<8x16xf32>
    %545 = arith.addf %538, %544 : vector<8x16xf32>
    %546 = vector.extract_strided_slice %540 {offsets = [0, 0], sizes = [8, 16], strides = [1, 1]} : vector<8x18xf32> to vector<8x16xf32>
    %c6_253 = arith.constant 6 : index
    %c3_254 = arith.constant 3 : index
    %547 = memref.load %arg9[%c6_253, %c3_254] : memref<9x4xf32, #tpu.memory_space<smem>>
    %548 = vector.broadcast %547 : f32 to vector<8x16xf32>
    %549 = arith.mulf %546, %548 : vector<8x16xf32>
    %550 = arith.addf %545, %549 : vector<8x16xf32>
    %551 = vector.extract_strided_slice %539 {offsets = [0, 1], sizes = [8, 16], strides = [1, 1]} : vector<8x18xf32> to vector<8x16xf32>
    %c7_255 = arith.constant 7 : index
    %c3_256 = arith.constant 3 : index
    %552 = memref.load %arg8[%c7_255, %c3_256] : memref<9x4xf32, #tpu.memory_space<smem>>
    %553 = vector.broadcast %552 : f32 to vector<8x16xf32>
    %554 = arith.mulf %551, %553 : vector<8x16xf32>
    %555 = arith.addf %550, %554 : vector<8x16xf32>
    %556 = vector.extract_strided_slice %540 {offsets = [0, 1], sizes = [8, 16], strides = [1, 1]} : vector<8x18xf32> to vector<8x16xf32>
    %c7_257 = arith.constant 7 : index
    %c3_258 = arith.constant 3 : index
    %557 = memref.load %arg9[%c7_257, %c3_258] : memref<9x4xf32, #tpu.memory_space<smem>>
    %558 = vector.broadcast %557 : f32 to vector<8x16xf32>
    %559 = arith.mulf %556, %558 : vector<8x16xf32>
    %560 = arith.addf %555, %559 : vector<8x16xf32>
    %561 = vector.extract_strided_slice %539 {offsets = [0, 2], sizes = [8, 16], strides = [1, 1]} : vector<8x18xf32> to vector<8x16xf32>
    %c8_259 = arith.constant 8 : index
    %c3_260 = arith.constant 3 : index
    %562 = memref.load %arg8[%c8_259, %c3_260] : memref<9x4xf32, #tpu.memory_space<smem>>
    %563 = vector.broadcast %562 : f32 to vector<8x16xf32>
    %564 = arith.mulf %561, %563 : vector<8x16xf32>
    %565 = arith.addf %560, %564 : vector<8x16xf32>
    %566 = vector.extract_strided_slice %540 {offsets = [0, 2], sizes = [8, 16], strides = [1, 1]} : vector<8x18xf32> to vector<8x16xf32>
    %c8_261 = arith.constant 8 : index
    %c3_262 = arith.constant 3 : index
    %567 = memref.load %arg9[%c8_261, %c3_262] : memref<9x4xf32, #tpu.memory_space<smem>>
    %568 = vector.broadcast %567 : f32 to vector<8x16xf32>
    %569 = arith.mulf %566, %568 : vector<8x16xf32>
    %570 = arith.addf %565, %569 : vector<8x16xf32>
    %c0_263 = arith.constant 0 : index
    %c3_264 = arith.constant 3 : index
    %571 = memref.load %arg10[%c0_263, %c3_264] : memref<1x4xf32, #tpu.memory_space<smem>>
    %572 = vector.broadcast %571 : f32 to vector<8x16xf32>
    %573 = arith.mulf %570, %572 : vector<8x16xf32>
    %c0_265 = arith.constant 0 : index
    %c3_266 = arith.constant 3 : index
    %574 = memref.load %arg11[%c0_265, %c3_266] : memref<1x4xf32, #tpu.memory_space<smem>>
    %575 = vector.broadcast %574 : f32 to vector<8x16xf32>
    %576 = arith.addf %573, %575 : vector<8x16xf32>
    %cst_267 = arith.constant 0.000000e+00 : f32
    %577 = vector.broadcast %cst_267 : f32 to vector<8x16xf32>
    %578 = arith.maximumf %576, %577 : vector<8x16xf32>
    %c0_268 = arith.constant 0 : index
    %c3_269 = arith.constant 3 : index
    %c0_270 = arith.constant 0 : index
    %c0_271 = arith.constant 0 : index
    %579 = vector.load %arg12[%c0_268, %c3_269, %c0_270, %c0_271] : memref<1x4x8x16xf32, #tpu.memory_space<vmem>>, vector<1x1x8x16xf32>
    %580 = vector.shape_cast %579 : vector<1x1x8x16xf32> to vector<8x16xf32>
    %581 = vector.shape_cast %578 : vector<8x16xf32> to vector<1x1x8x16xf32>
    tpu.vector_store %arg12[%c0_268, %c3_269, %c0_270, %c0_271], %581 {strides = array<i32>} : memref<1x4x8x16xf32, #tpu.memory_space<vmem>>, vector<1x1x8x16xf32>,
    return
  }
  func.func @transform_0(%arg0: i32, %arg1: i32) -> (i32, i32, i32, i32) {
    %c1_i32 = arith.constant 1 : i32
    %0 = arith.muli %arg1, %c1_i32 : i32
    %c1_i32_0 = arith.constant 1 : i32
    %1 = arith.subi %0, %c1_i32_0 : i32
    %c0_i32 = arith.constant 0 : i32
    %2 = arith.maxsi %1, %c0_i32 : i32
    %c0_i32_1 = arith.constant 0 : i32
    %c0_i32_2 = arith.constant 0 : i32
    %c0_i32_3 = arith.constant 0 : i32
    return %arg0, %c0_i32_1, %2, %c0_i32_2 : i32, i32, i32, i32
  }
  func.func @transform_1(%arg0: i32, %arg1: i32) -> (i32, i32, i32, i32) {
    %c0_i32 = arith.constant 0 : i32
    %c0_i32_0 = arith.constant 0 : i32
    %c0_i32_1 = arith.constant 0 : i32
    return %arg0, %c0_i32, %arg1, %c0_i32_0 : i32, i32, i32, i32
  }
  func.func @transform_2(%arg0: i32, %arg1: i32) -> (i32, i32, i32, i32) {
    %c1_i32 = arith.constant 1 : i32
    %0 = arith.addi %arg1, %c1_i32 : i32
    %c1_i32_0 = arith.constant 1 : i32
    %1 = arith.muli %0, %c1_i32_0 : i32
    %c1_i32_1 = arith.constant 1 : i32
    %2 = arith.minsi %1, %c1_i32_1 : i32
    %c0_i32 = arith.constant 0 : i32
    %c0_i32_2 = arith.constant 0 : i32
    %c0_i32_3 = arith.constant 0 : i32
    return %arg0, %c0_i32, %2, %c0_i32_2 : i32, i32, i32, i32
  }
  func.func @transform_3(%arg0: i32, %arg1: i32) -> (i32, i32) {
    %c0_i32 = arith.constant 0 : i32
    %c0_i32_0 = arith.constant 0 : i32
    %c0_i32_1 = arith.constant 0 : i32
    return %c0_i32, %c0_i32_0 : i32, i32
  }
  func.func @transform_4(%arg0: i32, %arg1: i32) -> (i32, i32) {
    %c0_i32 = arith.constant 0 : i32
    %c0_i32_0 = arith.constant 0 : i32
    %c0_i32_1 = arith.constant 0 : i32
    return %c0_i32, %c0_i32_0 : i32, i32
  }
  func.func @transform_5(%arg0: i32, %arg1: i32) -> (i32, i32) {
    %c0_i32 = arith.constant 0 : i32
    %c0_i32_0 = arith.constant 0 : i32
    %c0_i32_1 = arith.constant 0 : i32
    return %c0_i32, %c0_i32_0 : i32, i32
  }
  func.func @transform_6(%arg0: i32, %arg1: i32) -> (i32, i32) {
    %c0_i32 = arith.constant 0 : i32
    %c0_i32_0 = arith.constant 0 : i32
    %c0_i32_1 = arith.constant 0 : i32
    return %c0_i32, %c0_i32_0 : i32, i32
  }
  func.func @transform_7(%arg0: i32, %arg1: i32) -> (i32, i32) {
    %c0_i32 = arith.constant 0 : i32
    %c0_i32_0 = arith.constant 0 : i32
    %c0_i32_1 = arith.constant 0 : i32
    return %c0_i32, %c0_i32_0 : i32, i32
  }
  func.func @transform_8(%arg0: i32, %arg1: i32) -> (i32, i32) {
    %c0_i32 = arith.constant 0 : i32
    %c0_i32_0 = arith.constant 0 : i32
    %c0_i32_1 = arith.constant 0 : i32
    return %c0_i32, %c0_i32_0 : i32, i32
  }
  func.func @transform_9(%arg0: i32, %arg1: i32) -> (i32, i32) {
    %c0_i32 = arith.constant 0 : i32
    %c0_i32_0 = arith.constant 0 : i32
    %c0_i32_1 = arith.constant 0 : i32
    return %c0_i32, %c0_i32_0 : i32, i32
  }
  func.func @transform_10(%arg0: i32, %arg1: i32) -> (i32, i32, i32, i32) {
    %c0_i32 = arith.constant 0 : i32
    %c0_i32_0 = arith.constant 0 : i32
    %c0_i32_1 = arith.constant 0 : i32
    return %arg0, %c0_i32, %arg1, %c0_i32_0 : i32, i32, i32, i32
  }
}

</mosaic_0001>

<llo_original>
// kernel: tpu_custom_call.1
$region0: #{tpu_custom_call.1}
  #allocation0 [shape = 'u32[]', space=smem, size = 0x4, offset = 0x4, fixed_abs, tag = 'smem constant byte address 0x4 - core index']
  #allocation1 [shape = 'u32[144,128]{1,0:T(1,128)}', space=vmem, size = 0x12000, scoped, tag = 'internal scratch']
  #allocation2 [shape = 'f32[4,10,18]{2,1,0:T(8,128)}', space=vmem, size = 0x8000, scoped, tag = 'scratch operand']
  %s0 = inlined_call_operand.hbm [shape: f32[2,4,16,16], index: 0, kind: input, shape index: {}]
  %s1 = inlined_call_operand.hbm [shape: f32[2,4,16,16], index: 1, kind: input, shape index: {}]
  %s2 = inlined_call_operand.hbm [shape: f32[2,4,16,16], index: 2, kind: input, shape index: {}]
  %s3 = inlined_call_operand.vmem [shape: f32[4,4], index: 3, kind: input, shape index: {}]
  %s4 = inlined_call_operand.vmem [shape: f32[1,4], index: 4, kind: input, shape index: {}]
  %s5 = inlined_call_operand.vmem [shape: f32[1,4], index: 5, kind: input, shape index: {}]
  %s6 = inlined_call_operand.vmem [shape: f32[9,4], index: 6, kind: input, shape index: {}]
  %s7 = inlined_call_operand.vmem [shape: f32[9,4], index: 7, kind: input, shape index: {}]
  %s8 = inlined_call_operand.vmem [shape: f32[1,4], index: 8, kind: input, shape index: {}]
  %s9 = inlined_call_operand.vmem [shape: f32[1,4], index: 9, kind: input, shape index: {}]
  %s10 = inlined_call_operand.hbm [shape: f32[2,4,16,16], index: 10, kind: output, shape index: {}]
  %s11 = sld [smem:[#allocation0]]
  $region113: #{tpu_custom_call.1} parent=0
    _
  %s13 = ssub.s32 1, %s11
  %s14 = scalar_select 0, %s13, %s11
  $region1: #{tpu_custom_call.1} parent=0
    #allocation3 [shape = 'u8[32768]{0}', space=vmem, size = 0x8000, scoped, tag = 'input window, operand 0']
    #allocation4 [shape = 's32[2]{0}', space=sflag, size = 0x8, scoped, tag = 'scoped memory for tpu_custom_call.1']
    #allocation5 [shape = 's32[2]{0}', space=sflag, size = 0x8, scoped, tag = 'scoped memory for tpu_custom_call.1']
    #allocation6 [shape = 's32[2]{0}', space=sflag, size = 0x8, scoped, tag = 'scoped memory for tpu_custom_call.1']
    #allocation7 [shape = 'u8[32768]{0}', space=vmem, size = 0x8000, scoped, tag = 'input window, operand 1']
    #allocation8 [shape = 's32[2]{0}', space=sflag, size = 0x8, scoped, tag = 'scoped memory for tpu_custom_call.1']
    #allocation9 [shape = 'u8[32768]{0}', space=vmem, size = 0x8000, scoped, tag = 'input window, operand 2']
    #allocation10 [shape = 'u8[2048]{0}', space=smem, size = 0x800, scoped, tag = 'input window, operand 3, single buffered']
    #allocation11 [shape = 'u8[512]{0}', space=smem, size = 0x200, scoped, tag = 'input window, operand 4, single buffered']
    #allocation12 [shape = 's32[1]{0}', space=sflag, size = 0x4, scoped, tag = 'scoped memory for tpu_custom_call.1']
    #allocation13 [shape = 'u8[512]{0}', space=smem, size = 0x200, scoped, tag = 'input window, operand 5, single buffered']
    #allocation14 [shape = 'u8[8192]{0}', space=smem, size = 0x2000, scoped, tag = 'input window, operand 6, single buffered']
    #allocation15 [shape = 's32[1]{0}', space=sflag, size = 0x4, scoped, tag = 'scoped memory for tpu_custom_call.1']
    #allocation16 [shape = 'u8[8192]{0}', space=smem, size = 0x2000, scoped, tag = 'input window, operand 7, single buffered']
    #allocation17 [shape = 'u8[512]{0}', space=smem, size = 0x200, scoped, tag = 'input window, operand 8, single buffered']
    #allocation18 [shape = 's32[1]{0}', space=sflag, size = 0x4, scoped, tag = 'scoped memory for tpu_custom_call.1']
    #allocation19 [shape = 'u8[512]{0}', space=smem, size = 0x200, scoped, tag = 'input window, operand 9, single buffered']
    #allocation20 [shape = 'u8[32768]{0}', space=vmem, size = 0x8000, scoped, tag = 'output window, operand 0']
    %15 = vsyncpa [#allocation4], 0
    %s16 = scalar_lea.sflag [#allocation4], 1
    %17 = vsyncpa %s16, 0
    %18 = vsyncpa [#allocation8], 0
    %s19 = scalar_lea.sflag [#allocation8], 1
    %20 = vsyncpa %s19, 0
    %21 = vsyncpa [#allocation6], 0
    %22 = vsyncpa [#allocation12], 0
    %23 = vsyncpa [#allocation15], 0
    %24 = vsyncpa [#allocation18], 0
    %25 = vsyncpa [#allocation5], 0
    %s26 = scalar_lea.sflag [#allocation5], 1
    %27 = vsyncpa %s26, 0
    loop: start=0, step=1, limit=6
    $region2: #{tpu_custom_call.1} parent=1 // loop_pre_header
      _
    $region3: #{tpu_custom_call.1} parent=1 // loop_header
      %s29 = sphi 0, %s33
      %p30 = scmp.ge.s32.totalorder %s29, 6
      %s36 = sphi 0, %s48
      %s37 = sphi 0, %s44
      %s38 = sphi 0, %s36
      %s39 = sphi 0, %s37
      %s40 = sphi 0, %s38
      %s41 = sphi 0, %s39
      %s59 = sphi 0, %s61
      %s62 = sphi 0, %s59
      %s63 = sphi 0, %s62
      %s79 = sphi 0, %s63
      %s87 = sphi 0, %s89
      %s90 = sphi 0, %s87
      %s91 = sphi 0, %s90
      %s107 = sphi 0, %s91
      %s121 = sphi 0, %s123
      %s124 = sphi 0, %s121
      %s125 = sphi 0, %s124
      %s141 = sphi 0, %s125
      %s145 = sphi 0, %s145
      %s147 = sphi 0, %s145
      %s148 = sphi 0, %s147
      %s162 = sphi 0, %s148
      %s166 = sphi 0, %s166
      %s168 = sphi 0, %s166
      %s169 = sphi 0, %s168
      %s183 = sphi 0, %s169
      %s187 = sphi 0, %s187
      %s189 = sphi 0, %s187
      %s190 = sphi 0, %s189
      %s204 = sphi 0, %s190
      %s208 = sphi 0, %s208
      %s210 = sphi 0, %s208
      %s211 = sphi 0, %s210
      %s225 = sphi 0, %s211
      %s229 = sphi 0, %s229
      %s231 = sphi 0, %s229
      %s232 = sphi 0, %s231
      %s246 = sphi 0, %s232
      %s250 = sphi 0, %s250
      %s252 = sphi 0, %s250
      %s253 = sphi 0, %s252
      %s267 = sphi 0, %s253
      %s271 = sphi 0, %s271
      %s273 = sphi 0, %s271
      %s274 = sphi 0, %s273
      %s288 = sphi 0, %s274
      %s296 = sphi 0, %s298
      %s299 = sphi 0, %s296
      %s300 = sphi 0, %s299
      %s316 = sphi 0, %s300
    $region4: #{tpu_custom_call.1} parent=1 // loop_header_branch
      %32 = sbr.rel (%p30) target = $region8
    $region5: #{tpu_custom_call.1} parent=1 // loop_body
      %s34 = ssub.s32 %s29, 1
      %s35 = ssub.s32 %s29, 2
      %s42 = sadd.s32 1, %s37
      %p43 = scmp.ge.s32.totalorder %s42, 2
      %s44 = scalar_select %p43, 0, %s42
      %s45 = sadd.s32 1, %s36
      %s46 = scalar_select %p43, %s45, %s36
      %p47 = scmp.ge.s32.totalorder %s46, 2
      %s48 = scalar_select %p47, 0, %s46
      %s49 = ssub.s32 %s37, 1
      %p50 = scmp.gt.s32.totalorder %s49, 0
      %s51 = scalar_select %p50, %s49, 0
      %s52 = ssub.s32 %s44, 1
      %p53 = scmp.gt.s32.totalorder %s52, 0
      %s54 = scalar_select %p53, %s52, 0
      %s55 = ssub.s32 %s36, %s48
      %s56 = ssub.s32 %s51, %s54
      %s57 = sor.u32 %s55, %s56
      %p58 = scmp.eq.s32.totalorder %s57, 0
      %s60 = sadd.s32 %s59, 1
      %s61 = scalar_select %p58, %s59, %s60
      %p64 = pneg %p58
      %p65 = scmp.eq.s32.totalorder %s29, 3
      %p66 = por %p64, %p65
      %p67 = scmp.ne.s32.totalorder %s59, %s62
      %p68 = scmp.eq.s32.totalorder %s29, 0
      %p69 = por %p67, %p68
      %p70 = scmp.ne.s32.totalorder %s59, %s62
      %p71 = scmp.eq.s32.totalorder %s34, 3
      %p72 = por %p70, %p71
      %p73 = scmp.ne.s32.totalorder %s62, %s63
      %p74 = scmp.eq.s32.totalorder %s34, 0
      %p75 = por %p73, %p74
      %p76 = scmp.ne.s32.totalorder %s62, %s63
      %p77 = scmp.eq.s32.totalorder %s35, 3
      %p78 = por %p76, %p77
      %p80 = scmp.ne.s32.totalorder %s63, %s79
      %p81 = scmp.eq.s32.totalorder %s35, 0
      %p82 = por %p80, %p81
      %s83 = ssub.s32 %s36, %s48
      %s84 = ssub.s32 %s37, %s44
      %s85 = sor.u32 %s83, %s84
      %p86 = scmp.eq.s32.totalorder %s85, 0
      %s88 = sadd.s32 %s87, 1
      %s89 = scalar_select %p86, %s87, %s88
      %p92 = pneg %p86
      %p93 = scmp.eq.s32.totalorder %s29, 3
      %p94 = por %p92, %p93
      %p95 = scmp.ne.s32.totalorder %s87, %s90
      %p96 = scmp.eq.s32.totalorder %s29, 0
      %p97 = por %p95, %p96
      %p98 = scmp.ne.s32.totalorder %s87, %s90
      %p99 = scmp.eq.s32.totalorder %s34, 3
      %p100 = por %p98, %p99
      %p101 = scmp.ne.s32.totalorder %s90, %s91
      %p102 = scmp.eq.s32.totalorder %s34, 0
      %p103 = por %p101, %p102
      %p104 = scmp.ne.s32.totalorder %s90, %s91
      %p105 = scmp.eq.s32.totalorder %s35, 3
      %p106 = por %p104, %p105
      %p108 = scmp.ne.s32.totalorder %s91, %s107
      %p109 = scmp.eq.s32.totalorder %s35, 0
      %p110 = por %p108, %p109
      %s111 = sadd.s32 %s37, 1
      %p112 = scmp.lt.s32.totalorder %s111, 1
      %s113 = scalar_select %p112, %s111, 1
      %s114 = sadd.s32 %s44, 1
      %p115 = scmp.lt.s32.totalorder %s114, 1
      %s116 = scalar_select %p115, %s114, 1
      %s117 = ssub.s32 %s36, %s48
      %s118 = ssub.s32 %s113, %s116
      %s119 = sor.u32 %s117, %s118
      %p120 = scmp.eq.s32.totalorder %s119, 0
      %s122 = sadd.s32 %s121, 1
      %s123 = scalar_select %p120, %s121, %s122
      %p126 = pneg %p120
      %p127 = scmp.eq.s32.totalorder %s29, 3
      %p128 = por %p126, %p127
      %p129 = scmp.ne.s32.totalorder %s121, %s124
      %p130 = scmp.eq.s32.totalorder %s29, 0
      %p131 = por %p129, %p130
      %p132 = scmp.ne.s32.totalorder %s121, %s124
      %p133 = scmp.eq.s32.totalorder %s34, 3
      %p134 = por %p132, %p133
      %p135 = scmp.ne.s32.totalorder %s124, %s125
      %p136 = scmp.eq.s32.totalorder %s34, 0
      %p137 = por %p135, %p136
      %p138 = scmp.ne.s32.totalorder %s124, %s125
      %p139 = scmp.eq.s32.totalorder %s35, 3
      %p140 = por %p138, %p139
      %p142 = scmp.ne.s32.totalorder %s125, %s141
      %p143 = scmp.eq.s32.totalorder %s35, 0
      %p144 = por %p142, %p143
      %s146 = sadd.s32 %s145, 1
      %p149 = scmp.eq.s32.totalorder %s29, 3
      %p150 = scmp.ne.s32.totalorder %s145, %s147
      %p151 = scmp.eq.s32.totalorder %s29, 0
      %p152 = por %p150, %p151
      %p153 = scmp.ne.s32.totalorder %s145, %s147
      %p154 = scmp.eq.s32.totalorder %s34, 3
      %p155 = por %p153, %p154
      %p156 = scmp.ne.s32.totalorder %s147, %s148
      %p157 = scmp.eq.s32.totalorder %s34, 0
      %p158 = por %p156, %p157
      %p159 = scmp.ne.s32.totalorder %s147, %s148
      %p160 = scmp.eq.s32.totalorder %s35, 3
      %p161 = por %p159, %p160
      %p163 = scmp.ne.s32.totalorder %s148, %s162
      %p164 = scmp.eq.s32.totalorder %s35, 0
      %p165 = por %p163, %p164
      %s167 = sadd.s32 %s166, 1
      %p170 = scmp.eq.s32.totalorder %s29, 3
      %p171 = scmp.ne.s32.totalorder %s166, %s168
      %p172 = scmp.eq.s32.totalorder %s29, 0
      %p173 = por %p171, %p172
      %p174 = scmp.ne.s32.totalorder %s166, %s168
      %p175 = scmp.eq.s32.totalorder %s34, 3
      %p176 = por %p174, %p175
      %p177 = scmp.ne.s32.totalorder %s168, %s169
      %p178 = scmp.eq.s32.totalorder %s34, 0
      %p179 = por %p177, %p178
      %p180 = scmp.ne.s32.totalorder %s168, %s169
      %p181 = scmp.eq.s32.totalorder %s35, 3
      %p182 = por %p180, %p181
      %p184 = scmp.ne.s32.totalorder %s169, %s183
      %p185 = scmp.eq.s32.totalorder %s35, 0
      %p186 = por %p184, %p185
      %s188 = sadd.s32 %s187, 1
      %p191 = scmp.eq.s32.totalorder %s29, 3
      %p192 = scmp.ne.s32.totalorder %s187, %s189
      %p193 = scmp.eq.s32.totalorder %s29, 0
      %p194 = por %p192, %p193
      %p195 = scmp.ne.s32.totalorder %s187, %s189
      %p196 = scmp.eq.s32.totalorder %s34, 3
      %p197 = por %p195, %p196
      %p198 = scmp.ne.s32.totalorder %s189, %s190
      %p199 = scmp.eq.s32.totalorder %s34, 0
      %p200 = por %p198, %p199
      %p201 = scmp.ne.s32.totalorder %s189, %s190
      %p202 = scmp.eq.s32.totalorder %s35, 3
      %p203 = por %p201, %p202
      %p205 = scmp.ne.s32.totalorder %s190, %s204
      %p206 = scmp.eq.s32.totalorder %s35, 0
      %p207 = por %p205, %p206
      %s209 = sadd.s32 %s208, 1
      %p212 = scmp.eq.s32.totalorder %s29, 3
      %p213 = scmp.ne.s32.totalorder %s208, %s210
      %p214 = scmp.eq.s32.totalorder %s29, 0
      %p215 = por %p213, %p214
      %p216 = scmp.ne.s32.totalorder %s208, %s210
      %p217 = scmp.eq.s32.totalorder %s34, 3
      %p218 = por %p216, %p217
      %p219 = scmp.ne.s32.totalorder %s210, %s211
      %p220 = scmp.eq.s32.totalorder %s34, 0
      %p221 = por %p219, %p220
      %p222 = scmp.ne.s32.totalorder %s210, %s211
      %p223 = scmp.eq.s32.totalorder %s35, 3
      %p224 = por %p222, %p223
      %p226 = scmp.ne.s32.totalorder %s211, %s225
      %p227 = scmp.eq.s32.totalorder %s35, 0
      %p228 = por %p226, %p227
      %s230 = sadd.s32 %s229, 1
      %p233 = scmp.eq.s32.totalorder %s29, 3
      %p234 = scmp.ne.s32.totalorder %s229, %s231
      %p235 = scmp.eq.s32.totalorder %s29, 0
      %p236 = por %p234, %p235
      %p237 = scmp.ne.s32.totalorder %s229, %s231
      %p238 = scmp.eq.s32.totalorder %s34, 3
      %p239 = por %p237, %p238
      %p240 = scmp.ne.s32.totalorder %s231, %s232
      %p241 = scmp.eq.s32.totalorder %s34, 0
      %p242 = por %p240, %p241
      %p243 = scmp.ne.s32.totalorder %s231, %s232
      %p244 = scmp.eq.s32.totalorder %s35, 3
      %p245 = por %p243, %p244
      %p247 = scmp.ne.s32.totalorder %s232, %s246
      %p248 = scmp.eq.s32.totalorder %s35, 0
      %p249 = por %p247, %p248
      %s251 = sadd.s32 %s250, 1
      %p254 = scmp.eq.s32.totalorder %s29, 3
      %p255 = scmp.ne.s32.totalorder %s250, %s252
      %p256 = scmp.eq.s32.totalorder %s29, 0
      %p257 = por %p255, %p256
      %p258 = scmp.ne.s32.totalorder %s250, %s252
      %p259 = scmp.eq.s32.totalorder %s34, 3
      %p260 = por %p258, %p259
      %p261 = scmp.ne.s32.totalorder %s252, %s253
      %p262 = scmp.eq.s32.totalorder %s34, 0
      %p263 = por %p261, %p262
      %p264 = scmp.ne.s32.totalorder %s252, %s253
      %p265 = scmp.eq.s32.totalorder %s35, 3
      %p266 = por %p264, %p265
      %p268 = scmp.ne.s32.totalorder %s253, %s267
      %p269 = scmp.eq.s32.totalorder %s35, 0
      %p270 = por %p268, %p269
      %s272 = sadd.s32 %s271, 1
      %p275 = scmp.eq.s32.totalorder %s29, 3
      %p276 = scmp.ne.s32.totalorder %s271, %s273
      %p277 = scmp.eq.s32.totalorder %s29, 0
      %p278 = por %p276, %p277
      %p279 = scmp.ne.s32.totalorder %s271, %s273
      %p280 = scmp.eq.s32.totalorder %s34, 3
      %p281 = por %p279, %p280
      %p282 = scmp.ne.s32.totalorder %s273, %s274
      %p283 = scmp.eq.s32.totalorder %s34, 0
      %p284 = por %p282, %p283
      %p285 = scmp.ne.s32.totalorder %s273, %s274
      %p286 = scmp.eq.s32.totalorder %s35, 3
      %p287 = por %p285, %p286
      %p289 = scmp.ne.s32.totalorder %s274, %s288
      %p290 = scmp.eq.s32.totalorder %s35, 0
      %p291 = por %p289, %p290
      %s292 = ssub.s32 %s36, %s48
      %s293 = ssub.s32 %s37, %s44
      %s294 = sor.u32 %s292, %s293
      %p295 = scmp.eq.s32.totalorder %s294, 0
      %s297 = sadd.s32 %s296, 1
      %s298 = scalar_select %p295, %s296, %s297
      %p301 = pneg %p295
      %p302 = scmp.eq.s32.totalorder %s29, 3
      %p303 = por %p301, %p302
      %p304 = scmp.ne.s32.totalorder %s296, %s299
      %p305 = scmp.eq.s32.totalorder %s29, 0
      %p306 = por %p304, %p305
      %p307 = scmp.ne.s32.totalorder %s296, %s299
      %p308 = scmp.eq.s32.totalorder %s34, 3
      %p309 = por %p307, %p308
      %p310 = scmp.ne.s32.totalorder %s299, %s300
      %p311 = scmp.eq.s32.totalorder %s34, 0
      %p312 = por %p310, %p311
      %p313 = scmp.ne.s32.totalorder %s299, %s300
      %p314 = scmp.eq.s32.totalorder %s35, 3
      %p315 = por %p313, %p314
      %p317 = scmp.ne.s32.totalorder %s300, %s316
      %p318 = scmp.eq.s32.totalorder %s35, 0
      %p319 = por %p317, %p318
      %p320 = scmp.le.s32.totalorder 1, %s29
      %p321 = scmp.lt.s32.totalorder %s29, 5
      %p322 = pnand %p320, %p321
      %p323 = pneg %p322
      // Predicated region
      $region9: #{tpu_custom_call.1} parent=5 // pred_check
        _
      $region10: #{tpu_custom_call.1} parent=5 // pred_check_branch
        %325 = sbr.rel (%p322) target = $region12
      $region11: #{tpu_custom_call.1} parent=5 // pred_region
        %s326 = ssub.s32 %s29, 1
        // Predicated region
        $region13: #{tpu_custom_call.1} parent=11 // pred_check
          %p327 = pneg %p158
        $region14: #{tpu_custom_call.1} parent=11 // pred_check_branch
          %329 = sbr.rel (%p327) target = $region16
        $region15: #{tpu_custom_call.1} parent=11 // pred_region
          %s331 = ssub.s32 64, 64
          %332 = vsyncadd [#allocation6], %s331
          %s334 = sshll.u32 %s3, 4
          %s335 = int_to_ptr.vmem [resolvable:$true] %s334
          %337 = dma.vmem_to_smem %s335, 64, [#allocation10], [#allocation6]
        $region16: #{tpu_custom_call.1} parent=11 // pred_fallthru
          _
        // Predicated region
        $region17: #{tpu_custom_call.1} parent=11 // pred_check
          %p338 = pneg %p179
        $region18: #{tpu_custom_call.1} parent=11 // pred_check_branch
          %340 = sbr.rel (%p338) target = $region20
        $region19: #{tpu_custom_call.1} parent=11 // pred_region
          %s342 = ssub.s32 16, 16
          %343 = vsyncadd [#allocation12], %s342
          %s345 = sshll.u32 %s4, 4
          %s346 = int_to_ptr.vmem [resolvable:$true] %s345
          %348 = dma.vmem_to_smem %s346, 16, [#allocation11], [#allocation12]
        $region20: #{tpu_custom_call.1} parent=11 // pred_fallthru
          _
        // Predicated region
        $region21: #{tpu_custom_call.1} parent=11 // pred_check
          %p349 = pneg %p200
        $region22: #{tpu_custom_call.1} parent=11 // pred_check_branch
          %351 = sbr.rel (%p349) target = $region24
        $region23: #{tpu_custom_call.1} parent=11 // pred_region
          %s353 = ssub.s32 16, 16
          %354 = vsyncadd [#allocation12], %s353
          %s356 = sshll.u32 %s5, 4
          %s357 = int_to_ptr.vmem [resolvable:$true] %s356
          %359 = dma.vmem_to_smem %s357, 16, [#allocation13], [#allocation12]
        $region24: #{tpu_custom_call.1} parent=11 // pred_fallthru
          _
        // Predicated region
        $region25: #{tpu_custom_call.1} parent=11 // pred_check
          %p360 = pneg %p221
        $region26: #{tpu_custom_call.1} parent=11 // pred_check_branch
          %362 = sbr.rel (%p360) target = $region28
        $region27: #{tpu_custom_call.1} parent=11 // pred_region
          %s364 = ssub.s32 256, 256
          %365 = vsyncadd [#allocation15], %s364
          %s366 = sshll.u32 %s6, 4
          %s367 = int_to_ptr.vmem [resolvable:$true] %s366
          %372 = dma.vmem_to_smem %s367, 256, [#allocation14], [#allocation15], 128, 128, 8
        $region28: #{tpu_custom_call.1} parent=11 // pred_fallthru
          _
        // Predicated region
        $region29: #{tpu_custom_call.1} parent=11 // pred_check
          %p373 = pneg %p242
        $region30: #{tpu_custom_call.1} parent=11 // pred_check_branch
          %375 = sbr.rel (%p373) target = $region32
        $region31: #{tpu_custom_call.1} parent=11 // pred_region
          %s377 = ssub.s32 256, 256
          %378 = vsyncadd [#allocation15], %s377
          %s379 = sshll.u32 %s7, 4
          %s380 = int_to_ptr.vmem [resolvable:$true] %s379
          %385 = dma.vmem_to_smem %s380, 256, [#allocation16], [#allocation15], 128, 128, 8
        $region32: #{tpu_custom_call.1} parent=11 // pred_fallthru
          _
        // Predicated region
        $region33: #{tpu_custom_call.1} parent=11 // pred_check
          %p386 = pneg %p263
        $region34: #{tpu_custom_call.1} parent=11 // pred_check_branch
          %388 = sbr.rel (%p386) target = $region36
        $region35: #{tpu_custom_call.1} parent=11 // pred_region
          %s390 = ssub.s32 16, 16
          %391 = vsyncadd [#allocation18], %s390
          %s393 = sshll.u32 %s8, 4
          %s394 = int_to_ptr.vmem [resolvable:$true] %s393
          %396 = dma.vmem_to_smem %s394, 16, [#allocation17], [#allocation18]
        $region36: #{tpu_custom_call.1} parent=11 // pred_fallthru
          _
        // Predicated region
        $region37: #{tpu_custom_call.1} parent=11 // pred_check
          %p397 = pneg %p284
        $region38: #{tpu_custom_call.1} parent=11 // pred_check_branch
          %399 = sbr.rel (%p397) target = $region40
        $region39: #{tpu_custom_call.1} parent=11 // pred_region
          %s401 = ssub.s32 16, 16
          %402 = vsyncadd [#allocation18], %s401
          %s404 = sshll.u32 %s9, 4
          %s405 = int_to_ptr.vmem [resolvable:$true] %s404
          %407 = dma.vmem_to_smem %s405, 16, [#allocation19], [#allocation18]
        $region40: #{tpu_custom_call.1} parent=11 // pred_fallthru
          _
      $region12: #{tpu_custom_call.1} parent=5 // pred_fallthru
        _
      %p408 = scmp.lt.s32.totalorder %s29, 4
      // Predicated region
      $region41: #{tpu_custom_call.1} parent=5 // pred_check
        %p409 = pneg %p408
      $region42: #{tpu_custom_call.1} parent=5 // pred_check_branch
        %411 = sbr.rel (%p409) target = $region44
      $region43: #{tpu_custom_call.1} parent=5 // pred_region
        // Predicated region
        $region45: #{tpu_custom_call.1} parent=43 // pred_check
          %p412 = pneg %p69
        $region46: #{tpu_custom_call.1} parent=43 // pred_check_branch
          %414 = sbr.rel (%p412) target = $region48
        $region47: #{tpu_custom_call.1} parent=43 // pred_region
          %s415 = sand.u32 %s59, 1
          %s416 = scalar_lea.sflag [#allocation4], %s415
          %s417 = sand.u32 %s59, 1
          %s418 = smul.addr %s417, 32
          %s419 = scalar_lea.vmem [#allocation3], %s418
          %s420 = ssub.s32 %s37, 1
          %p421 = scmp.gt.s32.totalorder %s420, 0
          %s422 = scalar_select %p421, %s420, 0
          %s424 = ssub.s32 512, 512
          %425 = vsyncadd %s416, %s424
          %s426 = smul.addr %s36, 8
          %s427 = sadd.s32 %s422, %s426
          %s428 = smul.addr %s427, 128
          %s429 = scalar_lea.hbm %s0, %s428
          %s430 = sshll.u32 %s419, 4
          %s431 = int_to_ptr.vmem [resolvable:$true] %s430
          %436 = dma.hbm_to_vmem [thread:$0]  %s429, 512, %s431, %s416, 256, 128, 8
        $region48: #{tpu_custom_call.1} parent=43 // pred_fallthru
          _
        // Predicated region
        $region49: #{tpu_custom_call.1} parent=43 // pred_check
          %p437 = pneg %p97
        $region50: #{tpu_custom_call.1} parent=43 // pred_check_branch
          %439 = sbr.rel (%p437) target = $region52
        $region51: #{tpu_custom_call.1} parent=43 // pred_region
          %s440 = sand.u32 %s29, 1
          %s441 = scalar_lea.sflag [#allocation8], %s440
          %s442 = sand.u32 %s87, 1
          %s443 = smul.addr %s442, 32
          %s444 = scalar_lea.vmem [#allocation7], %s443
          %s446 = ssub.s32 512, 512
          %447 = vsyncadd %s441, %s446
          %s448 = smul.addr %s36, 8
          %s449 = sadd.s32 %s37, %s448
          %s450 = smul.addr %s449, 128
          %s451 = scalar_lea.hbm %s1, %s450
          %s452 = sshll.u32 %s444, 4
          %s453 = int_to_ptr.vmem [resolvable:$true] %s452
          %458 = dma.hbm_to_vmem [thread:$0]  %s451, 512, %s453, %s441, 256, 128, 8
        $region52: #{tpu_custom_call.1} parent=43 // pred_fallthru
          _
        // Predicated region
        $region53: #{tpu_custom_call.1} parent=43 // pred_check
          %p459 = pneg %p131
        $region54: #{tpu_custom_call.1} parent=43 // pred_check_branch
          %461 = sbr.rel (%p459) target = $region56
        $region55: #{tpu_custom_call.1} parent=43 // pred_region
          %s462 = sand.u32 %s29, 1
          %s463 = scalar_lea.sflag [#allocation8], %s462
          %s464 = sand.u32 %s121, 1
          %s465 = smul.addr %s464, 32
          %s466 = scalar_lea.vmem [#allocation9], %s465
          %s467 = sadd.s32 %s37, 1
          %p468 = scmp.lt.s32.totalorder %s467, 1
          %s469 = scalar_select %p468, %s467, 1
          %s471 = ssub.s32 512, 512
          %472 = vsyncadd %s463, %s471
          %s473 = smul.addr %s36, 8
          %s474 = sadd.s32 %s469, %s473
          %s475 = smul.addr %s474, 128
          %s476 = scalar_lea.hbm %s2, %s475
          %s477 = sshll.u32 %s466, 4
          %s478 = int_to_ptr.vmem [resolvable:$true] %s477
          %483 = dma.hbm_to_vmem [thread:$0]  %s476, 512, %s478, %s463, 256, 128, 8
        $region56: #{tpu_custom_call.1} parent=43 // pred_fallthru
          _
      $region44: #{tpu_custom_call.1} parent=5 // pred_fallthru
        _
      %p484 = scmp.le.s32.totalorder 1, %s29
      %p485 = scmp.lt.s32.totalorder %s29, 5
      %p486 = pnand %p484, %p485
      %p487 = pneg %p486
      // Predicated region
      $region57: #{tpu_custom_call.1} parent=5 // pred_check
        _
      $region58: #{tpu_custom_call.1} parent=5 // pred_check_branch
        %489 = sbr.rel (%p486) target = $region60
      $region59: #{tpu_custom_call.1} parent=5 // pred_region
        %s490 = ssub.s32 %s29, 1
        %s491 = sand.u32 %s62, 1
        %s492 = scalar_lea.sflag [#allocation4], %s491
        %s493 = sand.u32 %s62, 1
        %s494 = smul.addr %s493, 32
        %s495 = scalar_lea.vmem [#allocation3], %s494
        // Predicated region
        $region61: #{tpu_custom_call.1} parent=59 // pred_check
          %p496 = pneg %p75
        $region62: #{tpu_custom_call.1} parent=59 // pred_check_branch
          %498 = sbr.rel (%p496) target = $region64
        $region63: #{tpu_custom_call.1} parent=59 // pred_region
          %499 = dma.done %s492, 512
        $region64: #{tpu_custom_call.1} parent=59 // pred_fallthru
          _
        %s500 = sand.u32 %s34, 1
        %s501 = scalar_lea.sflag [#allocation8], %s500
        %s502 = sand.u32 %s90, 1
        %s503 = smul.addr %s502, 32
        %s504 = scalar_lea.vmem [#allocation7], %s503
        // Predicated region
        $region65: #{tpu_custom_call.1} parent=59 // pred_check
          %p505 = pneg %p103
        $region66: #{tpu_custom_call.1} parent=59 // pred_check_branch
          %507 = sbr.rel (%p505) target = $region68
        $region67: #{tpu_custom_call.1} parent=59 // pred_region
          %508 = dma.done %s501, 512
        $region68: #{tpu_custom_call.1} parent=59 // pred_fallthru
          _
        %s509 = sand.u32 %s34, 1
        %s510 = scalar_lea.sflag [#allocation8], %s509
        %s511 = sand.u32 %s124, 1
        %s512 = smul.addr %s511, 32
        %s513 = scalar_lea.vmem [#allocation9], %s512
        // Predicated region
        $region69: #{tpu_custom_call.1} parent=59 // pred_check
          %p514 = pneg %p137
        $region70: #{tpu_custom_call.1} parent=59 // pred_check_branch
          %516 = sbr.rel (%p514) target = $region72
        $region71: #{tpu_custom_call.1} parent=59 // pred_region
          %517 = dma.done %s510, 512
        $region72: #{tpu_custom_call.1} parent=59 // pred_fallthru
          _
        // Predicated region
        $region73: #{tpu_custom_call.1} parent=59 // pred_check
          %p518 = pneg %p158
        $region74: #{tpu_custom_call.1} parent=59 // pred_check_branch
          %520 = sbr.rel (%p518) target = $region76
        $region75: #{tpu_custom_call.1} parent=59 // pred_region
          %521 = dma.done [#allocation6], 64
        $region76: #{tpu_custom_call.1} parent=59 // pred_fallthru
          _
        // Predicated region
        $region77: #{tpu_custom_call.1} parent=59 // pred_check
          %p522 = pneg %p179
        $region78: #{tpu_custom_call.1} parent=59 // pred_check_branch
          %524 = sbr.rel (%p522) target = $region80
        $region79: #{tpu_custom_call.1} parent=59 // pred_region
          %525 = dma.done [#allocation12], 16
        $region80: #{tpu_custom_call.1} parent=59 // pred_fallthru
          _
        // Predicated region
        $region81: #{tpu_custom_call.1} parent=59 // pred_check
          %p526 = pneg %p200
        $region82: #{tpu_custom_call.1} parent=59 // pred_check_branch
          %528 = sbr.rel (%p526) target = $region84
        $region83: #{tpu_custom_call.1} parent=59 // pred_region
          %529 = dma.done [#allocation12], 16
        $region84: #{tpu_custom_call.1} parent=59 // pred_fallthru
          _
        // Predicated region
        $region85: #{tpu_custom_call.1} parent=59 // pred_check
          %p530 = pneg %p221
        $region86: #{tpu_custom_call.1} parent=59 // pred_check_branch
          %532 = sbr.rel (%p530) target = $region88
        $region87: #{tpu_custom_call.1} parent=59 // pred_region
          %533 = dma.done [#allocation15], 256
        $region88: #{tpu_custom_call.1} parent=59 // pred_fallthru
          _
        // Predicated region
        $region89: #{tpu_custom_call.1} parent=59 // pred_check
          %p534 = pneg %p242
        $region90: #{tpu_custom_call.1} parent=59 // pred_check_branch
          %536 = sbr.rel (%p534) target = $region92
        $region91: #{tpu_custom_call.1} parent=59 // pred_region
          %537 = dma.done [#allocation15], 256
        $region92: #{tpu_custom_call.1} parent=59 // pred_fallthru
          _
        // Predicated region
        $region93: #{tpu_custom_call.1} parent=59 // pred_check
          %p538 = pneg %p263
        $region94: #{tpu_custom_call.1} parent=59 // pred_check_branch
          %540 = sbr.rel (%p538) target = $region96
        $region95: #{tpu_custom_call.1} parent=59 // pred_region
          %541 = dma.done [#allocation18], 16
        $region96: #{tpu_custom_call.1} parent=59 // pred_fallthru
          _
        // Predicated region
        $region97: #{tpu_custom_call.1} parent=59 // pred_check
          %p542 = pneg %p284
        $region98: #{tpu_custom_call.1} parent=59 // pred_check_branch
          %544 = sbr.rel (%p542) target = $region100
        $region99: #{tpu_custom_call.1} parent=59 // pred_region
          %545 = dma.done [#allocation18], 16
        $region100: #{tpu_custom_call.1} parent=59 // pred_fallthru
          _
        %546 = sfence
        %s547 = sand.u32 %s62, 1
        %s548 = scalar_lea.sflag [#allocation4], %s547
        %s549 = sand.u32 %s62, 1
        %s550 = smul.addr %s549, 32
        %s551 = scalar_lea.vmem [#allocation3], %s550
        %p552 = pneg %p75
        %p553 = pneg %p72
        %s554 = sand.u32 %s34, 1
        %s555 = scalar_lea.sflag [#allocation8], %s554
        %s556 = sand.u32 %s90, 1
        %s557 = smul.addr %s556, 32
        %s558 = scalar_lea.vmem [#allocation7], %s557
        %p559 = pneg %p103
        %p560 = pneg %p100
        %s561 = sand.u32 %s34, 1
        %s562 = scalar_lea.sflag [#allocation8], %s561
        %s563 = sand.u32 %s124, 1
        %s564 = smul.addr %s563, 32
        %s565 = scalar_lea.vmem [#allocation9], %s564
        %p566 = pneg %p137
        %p567 = pneg %p134
        %p568 = pneg %p158
        %p569 = pneg %p155
        %p570 = pneg %p179
        %p571 = pneg %p176
        %p572 = pneg %p200
        %p573 = pneg %p197
        %p574 = pneg %p221
        %p575 = pneg %p218
        %p576 = pneg %p242
        %p577 = pneg %p239
        %p578 = pneg %p263
        %p579 = pneg %p260
        %p580 = pneg %p284
        %p581 = pneg %p281
        %p582 = pneg %p312
        %p583 = pneg %p309
        %s584 = sand.u32 %s299, 1
        %s585 = scalar_lea.sflag [#allocation5], %s584
        %s586 = sand.u32 %s299, 1
        %s587 = smul.addr %s586, 32
        %s588 = scalar_lea.vmem [#allocation20], %s587
        %s589 = ssub.s32 %s39, 1
        %p590 = scmp.gt.s32.totalorder %s589, 0
        %s591 = scalar_select %p590, %s589, 0
        %s592 = sadd.s32 %s39, 1
        %p593 = scmp.lt.s32.totalorder %s592, 1
        %s594 = scalar_select %p593, %s592, 1
        %s595 = smul.u32 %s39, 8
        %s596 = ssub.s32 %s595, 1
        %v597 = vlaneseq
        %v598 = vshrl.u32 %v597, 7
        %v599 = vadd.s32 %v598, 8
        %v600 = vstv %s596
        %v601 = vadd.s32 %v598, %v600
        %v602 = vadd.s32 %v599, %v600
        %v603 = vlaneseq
        %v604 = vand.u32 %v603, 127
        %vm605 = vcmp.ge.s32.totalorder %v601, 0
        %vm606 = vcmp.ge.s32.totalorder %v602, 0
        %vm607 = vcmp.lt.s32.totalorder %v601, 16
        %vm608 = vcmp.lt.s32.totalorder %v602, 16
        %vm609 = vmand %vm605, %vm607
        %vm610 = vmand %vm606, %vm608
        %vm611 = vcmp.ge.s32.totalorder %v604, 1
        %vm612 = vcmp.lt.s32.totalorder %v604, 17
        %vm613 = vmand %vm611, %vm612
        %vm614 = vmand %vm609, %vm613
        %vm615 = vmand %vm610, %vm613
        %vm616 = vcmask 7168
        %617 = vst.msk [vmem:[#allocation2] sm:$0xff] %vm616, 0.0
        %vm618 = vcmask 1024
        %619 = vst.msk [vmem:[#allocation2 + $0x8] sm:$0x3] %vm618, 0.0
        %620 = vst.msk [vmem:[#allocation2 + $0x10] sm:$0xff] %vm616, 0.0
        %621 = vst.msk [vmem:[#allocation2 + $0x18] sm:$0x3] %vm618, 0.0
        %622 = vst.msk [vmem:[#allocation2 + $0x20] sm:$0xff] %vm616, 0.0
        %623 = vst.msk [vmem:[#allocation2 + $0x28] sm:$0x3] %vm618, 0.0
        %624 = vst.msk [vmem:[#allocation2 + $0x30] sm:$0xff] %vm616, 0.0
        %625 = vst.msk [vmem:[#allocation2 + $0x38] sm:$0x3] %vm618, 0.0
        %vm626 = vcmask 146568
        %627 = vst.msk [vmem:[#allocation2] sm:$0xff] %vm626, 0.0
        %vm628 = vcmask 140424
        %629 = vst.msk [vmem:[#allocation2 + $0x8] sm:$0x3] %vm628, 0.0
        %630 = vst.msk [vmem:[#allocation2 + $0x10] sm:$0xff] %vm626, 0.0
        %631 = vst.msk [vmem:[#allocation2 + $0x18] sm:$0x3] %vm628, 0.0
        %632 = vst.msk [vmem:[#allocation2 + $0x20] sm:$0xff] %vm626, 0.0
        %633 = vst.msk [vmem:[#allocation2 + $0x28] sm:$0x3] %vm628, 0.0
        %634 = vst.msk [vmem:[#allocation2 + $0x30] sm:$0xff] %vm626, 0.0
        %635 = vst.msk [vmem:[#allocation2 + $0x38] sm:$0x3] %vm628, 0.0
        %v636 = vld [vmem:[%s495 + $0x7] sm:$0x1]
        %v637 = vld [vmem:[%s495 + $0xf] sm:$0x1]
        %v638 = vld [vmem:[%s495 + $0x17] sm:$0x1]
        %v639 = vld [vmem:[%s495 + $0x1f] sm:$0x1]
        %v640 = vsel %vm609, 1, 0
        %vm641 = vcmp.eq.s32.totalorder %v640, 1
        %v642 = vsel %vm641, %v636, 0.0
        %v643 = vsel %vm641, %v637, 0.0
        %v644 = vsel %vm641, %v638, 0.0
        %v645 = vsel %vm641, %v639, 0.0
        %650 = vrot.lane.b32.xlu0 %v642, 1
        %v651 = vpop.permute.xlu0 %650
        %652 = vrot.lane.b32.xlu0 %v643, 1
        %v653 = vpop.permute.xlu0 %652
        %654 = vrot.lane.b32.xlu0 %v644, 1
        %v655 = vpop.permute.xlu0 %654
        %656 = vrot.lane.b32.xlu0 %v645, 1
        %v657 = vpop.permute.xlu0 %656
        %vm662 = vcmask 131080
        %663 = vst.msk [vmem:[#allocation2] sm:$0x1] %vm662, %v651
        %664 = vst.msk [vmem:[#allocation2 + $0x10] sm:$0x1] %vm662, %v653
        %665 = vst.msk [vmem:[#allocation2 + $0x20] sm:$0x1] %vm662, %v655
        %666 = vst.msk [vmem:[#allocation2 + $0x30] sm:$0x1] %vm662, %v657
        %v667 = vld [vmem:[%s504] sm:$0xff]
        %v668 = vld [vmem:[%s504 + $0x8] sm:$0xff]
        %v669 = vld [vmem:[%s504 + $0x10] sm:$0xff]
        %v670 = vld [vmem:[%s504 + $0x18] sm:$0xff]
        %675 = vrot.lane.b32.xlu0 %v667, 1
        %v676 = vpop.permute.xlu0 %675
        %677 = vrot.lane.b32.xlu0 %v668, 1
        %v678 = vpop.permute.xlu0 %677
        %679 = vrot.lane.b32.xlu0 %v669, 1
        %v680 = vpop.permute.xlu0 %679
        %681 = vrot.lane.b32.xlu0 %v670, 1
        %v682 = vpop.permute.xlu0 %681
        %vm687 = vcmask 138248
        %688 = vst.msk [vmem:[#allocation2 + $0x1] sm:$0xff] %vm687, %v676
        %689 = vst.msk [vmem:[#allocation2 + $0x11] sm:$0xff] %vm687, %v678
        %690 = vst.msk [vmem:[#allocation2 + $0x21] sm:$0xff] %vm687, %v680
        %691 = vst.msk [vmem:[#allocation2 + $0x31] sm:$0xff] %vm687, %v682
        %v692 = vld [vmem:[%s513] sm:$0x1]
        %v693 = vld [vmem:[%s513 + $0x8] sm:$0x1]
        %v694 = vld [vmem:[%s513 + $0x10] sm:$0x1]
        %v695 = vld [vmem:[%s513 + $0x18] sm:$0x1]
        %v696 = vsel %vm610, 1, 0
        %vm697 = vcmp.eq.s32.totalorder %v696, 1
        %v702 = vrot.slane %v692, 7
        %v703 = vrot.slane %v693, 7
        %v704 = vrot.slane %v694, 7
        %v705 = vrot.slane %v695, 7
        %v710 = vsel %vm697, %v702, 0.0
        %v711 = vsel %vm697, %v703, 0.0
        %v712 = vsel %vm697, %v704, 0.0
        %v713 = vsel %vm697, %v705, 0.0
        %718 = vrot.lane.b32.xlu0 %v710, 1
        %v719 = vpop.permute.xlu0 %718
        %720 = vrot.lane.b32.xlu0 %v711, 1
        %v721 = vpop.permute.xlu0 %720
        %722 = vrot.lane.b32.xlu0 %v712, 1
        %v723 = vpop.permute.xlu0 %722
        %724 = vrot.lane.b32.xlu0 %v713, 1
        %v725 = vpop.permute.xlu0 %724
        %vm730 = vcmask 132105
        %731 = vst.msk [vmem:[#allocation2 + $0x8] sm:$0x2] %vm730, %v719
        %732 = vst.msk [vmem:[#allocation2 + $0x18] sm:$0x2] %vm730, %v721
        %733 = vst.msk [vmem:[#allocation2 + $0x28] sm:$0x2] %vm730, %v723
        %734 = vst.msk [vmem:[#allocation2 + $0x38] sm:$0x2] %vm730, %v725
        %v735 = vld [vmem:[#allocation2] sm:$0xff]
        %v736 = vld [vmem:[#allocation2 + $0x8] sm:$0x3]
        %s737 = scalar_lea.vmem [#allocation2], 16
        %v738 = vld [vmem:[%s737] sm:$0xff]
        %v739 = vld [vmem:[%s737 + $0x8] sm:$0x3]
        %s740 = scalar_lea.vmem [#allocation2], 32
        %v741 = vld [vmem:[%s740] sm:$0xff]
        %v742 = vld [vmem:[%s740 + $0x8] sm:$0x3]
        %s743 = scalar_lea.vmem [#allocation2], 48
        %v744 = vld [vmem:[%s743] sm:$0xff]
        %v745 = vld [vmem:[%s743 + $0x8] sm:$0x3]
        %s746 = sld [smem:[#allocation10]]
        %v747 = vstv %s746
        %v748 = vmul.f32 %v735, %v747
        %v749 = vmul.f32 %v736, %v747
        %s750 = sld [smem:[#allocation10 + $0x80]]
        %v751 = vstv %s750
        %v752 = vmul.f32 %v738, %v751
        %v753 = vmul.f32 %v739, %v751
        %v754 = vadd.f32 %v748, %v752
        %v755 = vadd.f32 %v749, %v753
        %s756 = sld [smem:[#allocation10 + $0x100]]
        %v757 = vstv %s756
        %v758 = vmul.f32 %v741, %v757
        %v759 = vmul.f32 %v742, %v757
        %v760 = vadd.f32 %v754, %v758
        %v761 = vadd.f32 %v755, %v759
        %s762 = sld [smem:[#allocation10 + $0x180]]
        %v763 = vstv %s762
        %v764 = vmul.f32 %v744, %v763
        %v765 = vmul.f32 %v745, %v763
        %v766 = vadd.f32 %v760, %v764
        %v767 = vadd.f32 %v761, %v765
        %s768 = sld [smem:[#allocation11]]
        %v769 = vstv %s768
        %v770 = vmul.f32 %v766, %v769
        %v771 = vmul.f32 %v767, %v769
        %s772 = sld [smem:[#allocation13]]
        %v773 = vstv %s772
        %v774 = vadd.f32 %v770, %v773
        %v775 = vadd.f32 %v771, %v773
        %v776 = vmax.f32 %v774, 0.0
        %v777 = vmax.f32 %v775, 0.0
        %v778 = vsel %vm614, %v776, 0.0
        %v779 = vsel %vm615, %v777, 0.0
        %s780 = sld [smem:[#allocation14]]
        %v781 = vstv %s780
        %v782 = vmul.f32 %v778, %v781
        %v783 = vadd.f32 %v782, 0.0
        %s784 = sld [smem:[#allocation16]]
        %v785 = vstv %s784
        %v786 = vmul.f32 %v735, %v785
        %v787 = vadd.f32 %v783, %v786
        %s788 = sld [smem:[#allocation14 + $0x80]]
        %v789 = vstv %s788
        %v790 = vmul.f32 %v778, %v789
        %792 = vrot.lane.b32.xlu0 %v790, 127
        %v793 = vpop.permute.xlu0 %792
        %v795 = vadd.f32 %v787, %v793
        %s796 = sld [smem:[#allocation16 + $0x80]]
        %v797 = vstv %s796
        %v798 = vmul.f32 %v735, %v797
        %800 = vrot.lane.b32.xlu0 %v798, 127
        %v801 = vpop.permute.xlu0 %800
        %v803 = vadd.f32 %v795, %v801
        %s804 = sld [smem:[#allocation14 + $0x100]]
        %v805 = vstv %s804
        %v806 = vmul.f32 %v778, %v805
        %808 = vrot.lane.b32.xlu0 %v806, 126
        %v809 = vpop.permute.xlu0 %808
        %v811 = vadd.f32 %v803, %v809
        %s812 = sld [smem:[#allocation16 + $0x100]]
        %v813 = vstv %s812
        %v814 = vmul.f32 %v735, %v813
        %816 = vrot.lane.b32.xlu0 %v814, 126
        %v817 = vpop.permute.xlu0 %816
        %v819 = vadd.f32 %v811, %v817
        %s820 = sld [smem:[#allocation14 + $0x180]]
        %v821 = vstv %s820
        %v822 = vmul.f32 %v778, %v821
        %v823 = vmul.f32 %v779, %v821
        %vm826 = vcmask 1046528
        %v827 = vrot.slane %v822, 1
        %v828 = vrot.slane %v823, 1
        %v829 = vsel %vm826, %v827, %v828
        %v831 = vadd.f32 %v819, %v829
        %s832 = sld [smem:[#allocation16 + $0x180]]
        %v833 = vstv %s832
        %v834 = vmul.f32 %v735, %v833
        %v835 = vmul.f32 %v736, %v833
        %v838 = vrot.slane %v834, 1
        %v839 = vrot.slane %v835, 1
        %v840 = vsel %vm826, %v838, %v839
        %v842 = vadd.f32 %v831, %v840
        %s843 = sld [smem:[#allocation14 + $0x200]]
        %v844 = vstv %s843
        %v845 = vmul.f32 %v778, %v844
        %v846 = vmul.f32 %v779, %v844
        %v849 = vrot.slane %v845, 1
        %v850 = vrot.slane %v846, 1
        %v851 = vsel %vm826, %v849, %v850
        %852 = vrot.lane.b32.xlu0 %v851, 127
        %v853 = vpop.permute.xlu0 %852
        %v855 = vadd.f32 %v842, %v853
        %s856 = sld [smem:[#allocation16 + $0x200]]
        %v857 = vstv %s856
        %v858 = vmul.f32 %v735, %v857
        %v859 = vmul.f32 %v736, %v857
        %v862 = vrot.slane %v858, 1
        %v863 = vrot.slane %v859, 1
        %v864 = vsel %vm826, %v862, %v863
        %865 = vrot.lane.b32.xlu0 %v864, 127
        %v866 = vpop.permute.xlu0 %865
        %v868 = vadd.f32 %v855, %v866
        %s869 = sld [smem:[#allocation14 + $0x280]]
        %v870 = vstv %s869
        %v871 = vmul.f32 %v778, %v870
        %v872 = vmul.f32 %v779, %v870
        %v875 = vrot.slane %v871, 1
        %v876 = vrot.slane %v872, 1
        %v877 = vsel %vm826, %v875, %v876
        %878 = vrot.lane.b32.xlu0 %v877, 126
        %v879 = vpop.permute.xlu0 %878
        %v881 = vadd.f32 %v868, %v879
        %s882 = sld [smem:[#allocation16 + $0x280]]
        %v883 = vstv %s882
        %v884 = vmul.f32 %v735, %v883
        %v885 = vmul.f32 %v736, %v883
        %v888 = vrot.slane %v884, 1
        %v889 = vrot.slane %v885, 1
        %v890 = vsel %vm826, %v888, %v889
        %891 = vrot.lane.b32.xlu0 %v890, 126
        %v892 = vpop.permute.xlu0 %891
        %v894 = vadd.f32 %v881, %v892
        %s895 = sld [smem:[#allocation14 + $0x300]]
        %v896 = vstv %s895
        %v897 = vmul.f32 %v778, %v896
        %v898 = vmul.f32 %v779, %v896
        %vm901 = vcmask 1045504
        %v902 = vrot.slane %v897, 2
        %v903 = vrot.slane %v898, 2
        %v904 = vsel %vm901, %v902, %v903
        %v906 = vadd.f32 %v894, %v904
        %s907 = sld [smem:[#allocation16 + $0x300]]
        %v908 = vstv %s907
        %v909 = vmul.f32 %v735, %v908
        %v910 = vmul.f32 %v736, %v908
        %v913 = vrot.slane %v909, 2
        %v914 = vrot.slane %v910, 2
        %v915 = vsel %vm901, %v913, %v914
        %v917 = vadd.f32 %v906, %v915
        %s918 = sld [smem:[#allocation14 + $0x380]]
        %v919 = vstv %s918
        %v920 = vmul.f32 %v778, %v919
        %v921 = vmul.f32 %v779, %v919
        %v924 = vrot.slane %v920, 2
        %v925 = vrot.slane %v921, 2
        %v926 = vsel %vm901, %v924, %v925
        %927 = vrot.lane.b32.xlu0 %v926, 127
        %v928 = vpop.permute.xlu0 %927
        %v930 = vadd.f32 %v917, %v928
        %s931 = sld [smem:[#allocation16 + $0x380]]
        %v932 = vstv %s931
        %v933 = vmul.f32 %v735, %v932
        %v934 = vmul.f32 %v736, %v932
        %v937 = vrot.slane %v933, 2
        %v938 = vrot.slane %v934, 2
        %v939 = vsel %vm901, %v937, %v938
        %940 = vrot.lane.b32.xlu0 %v939, 127
        %v941 = vpop.permute.xlu0 %940
        %v943 = vadd.f32 %v930, %v941
        %s944 = sld [smem:[#allocation14 + $0x400]]
        %v945 = vstv %s944
        %v946 = vmul.f32 %v778, %v945
        %v947 = vmul.f32 %v779, %v945
        %v950 = vrot.slane %v946, 2
        %v951 = vrot.slane %v947, 2
        %v952 = vsel %vm901, %v950, %v951
        %953 = vrot.lane.b32.xlu0 %v952, 126
        %v954 = vpop.permute.xlu0 %953
        %v956 = vadd.f32 %v943, %v954
        %s957 = sld [smem:[#allocation16 + $0x400]]
        %v958 = vstv %s957
        %v959 = vmul.f32 %v735, %v958
        %v960 = vmul.f32 %v736, %v958
        %v963 = vrot.slane %v959, 2
        %v964 = vrot.slane %v960, 2
        %v965 = vsel %vm901, %v963, %v964
        %966 = vrot.lane.b32.xlu0 %v965, 126
        %v967 = vpop.permute.xlu0 %966
        %v969 = vadd.f32 %v956, %v967
        %s970 = sld [smem:[#allocation17]]
        %v971 = vstv %s970
        %v972 = vmul.f32 %v969, %v971
        %s973 = sld [smem:[#allocation19]]
        %v974 = vstv %s973
        %v975 = vadd.f32 %v972, %v974
        %v976 = vmax.f32 %v975, 0.0
        %vm977 = vcmask 130048
        %978 = vst.msk [vmem:[%s588] sm:$0xff] %vm977, %v976
        %s979 = sld [smem:[#allocation10 + $0x1]]
        %v980 = vstv %s979
        %v981 = vmul.f32 %v735, %v980
        %v982 = vmul.f32 %v736, %v980
        %s983 = sld [smem:[#allocation10 + $0x81]]
        %v984 = vstv %s983
        %v985 = vmul.f32 %v738, %v984
        %v986 = vmul.f32 %v739, %v984
        %v987 = vadd.f32 %v981, %v985
        %v988 = vadd.f32 %v982, %v986
        %s989 = sld [smem:[#allocation10 + $0x101]]
        %v990 = vstv %s989
        %v991 = vmul.f32 %v741, %v990
        %v992 = vmul.f32 %v742, %v990
        %v993 = vadd.f32 %v987, %v991
        %v994 = vadd.f32 %v988, %v992
        %s995 = sld [smem:[#allocation10 + $0x181]]
        %v996 = vstv %s995
        %v997 = vmul.f32 %v744, %v996
        %v998 = vmul.f32 %v745, %v996
        %v999 = vadd.f32 %v993, %v997
        %v1000 = vadd.f32 %v994, %v998
        %s1001 = sld [smem:[#allocation11 + $0x1]]
        %v1002 = vstv %s1001
        %v1003 = vmul.f32 %v999, %v1002
        %v1004 = vmul.f32 %v1000, %v1002
        %s1005 = sld [smem:[#allocation13 + $0x1]]
        %v1006 = vstv %s1005
        %v1007 = vadd.f32 %v1003, %v1006
        %v1008 = vadd.f32 %v1004, %v1006
        %v1009 = vmax.f32 %v1007, 0.0
        %v1010 = vmax.f32 %v1008, 0.0
        %v1011 = vsel %vm614, %v1009, 0.0
        %v1012 = vsel %vm615, %v1010, 0.0
        %s1013 = sld [smem:[#allocation14 + $0x1]]
        %v1014 = vstv %s1013
        %v1015 = vmul.f32 %v1011, %v1014
        %v1016 = vadd.f32 %v1015, 0.0
        %s1017 = sld [smem:[#allocation16 + $0x1]]
        %v1018 = vstv %s1017
        %v1019 = vmul.f32 %v738, %v1018
        %v1020 = vadd.f32 %v1016, %v1019
        %s1021 = sld [smem:[#allocation14 + $0x81]]
        %v1022 = vstv %s1021
        %v1023 = vmul.f32 %v1011, %v1022
        %1025 = vrot.lane.b32.xlu0 %v1023, 127
        %v1026 = vpop.permute.xlu0 %1025
        %v1028 = vadd.f32 %v1020, %v1026
        %s1029 = sld [smem:[#allocation16 + $0x81]]
        %v1030 = vstv %s1029
        %v1031 = vmul.f32 %v738, %v1030
        %1033 = vrot.lane.b32.xlu0 %v1031, 127
        %v1034 = vpop.permute.xlu0 %1033
        %v1036 = vadd.f32 %v1028, %v1034
        %s1037 = sld [smem:[#allocation14 + $0x101]]
        %v1038 = vstv %s1037
        %v1039 = vmul.f32 %v1011, %v1038
        %1041 = vrot.lane.b32.xlu0 %v1039, 126
        %v1042 = vpop.permute.xlu0 %1041
        %v1044 = vadd.f32 %v1036, %v1042
        %s1045 = sld [smem:[#allocation16 + $0x101]]
        %v1046 = vstv %s1045
        %v1047 = vmul.f32 %v738, %v1046
        %1049 = vrot.lane.b32.xlu0 %v1047, 126
        %v1050 = vpop.permute.xlu0 %1049
        %v1052 = vadd.f32 %v1044, %v1050
        %s1053 = sld [smem:[#allocation14 + $0x181]]
        %v1054 = vstv %s1053
        %v1055 = vmul.f32 %v1011, %v1054
        %v1056 = vmul.f32 %v1012, %v1054
        %v1059 = vrot.slane %v1055, 1
        %v1060 = vrot.slane %v1056, 1
        %v1061 = vsel %vm826, %v1059, %v1060
        %v1063 = vadd.f32 %v1052, %v1061
        %s1064 = sld [smem:[#allocation16 + $0x181]]
        %v1065 = vstv %s1064
        %v1066 = vmul.f32 %v738, %v1065
        %v1067 = vmul.f32 %v739, %v1065
        %v1070 = vrot.slane %v1066, 1
        %v1071 = vrot.slane %v1067, 1
        %v1072 = vsel %vm826, %v1070, %v1071
        %v1074 = vadd.f32 %v1063, %v1072
        %s1075 = sld [smem:[#allocation14 + $0x201]]
        %v1076 = vstv %s1075
        %v1077 = vmul.f32 %v1011, %v1076
        %v1078 = vmul.f32 %v1012, %v1076
        %v1081 = vrot.slane %v1077, 1
        %v1082 = vrot.slane %v1078, 1
        %v1083 = vsel %vm826, %v1081, %v1082
        %1084 = vrot.lane.b32.xlu0 %v1083, 127
        %v1085 = vpop.permute.xlu0 %1084
        %v1087 = vadd.f32 %v1074, %v1085
        %s1088 = sld [smem:[#allocation16 + $0x201]]
        %v1089 = vstv %s1088
        %v1090 = vmul.f32 %v738, %v1089
        %v1091 = vmul.f32 %v739, %v1089
        %v1094 = vrot.slane %v1090, 1
        %v1095 = vrot.slane %v1091, 1
        %v1096 = vsel %vm826, %v1094, %v1095
        %1097 = vrot.lane.b32.xlu0 %v1096, 127
        %v1098 = vpop.permute.xlu0 %1097
        %v1100 = vadd.f32 %v1087, %v1098
        %s1101 = sld [smem:[#allocation14 + $0x281]]
        %v1102 = vstv %s1101
        %v1103 = vmul.f32 %v1011, %v1102
        %v1104 = vmul.f32 %v1012, %v1102
        %v1107 = vrot.slane %v1103, 1
        %v1108 = vrot.slane %v1104, 1
        %v1109 = vsel %vm826, %v1107, %v1108
        %1110 = vrot.lane.b32.xlu0 %v1109, 126
        %v1111 = vpop.permute.xlu0 %1110
        %v1113 = vadd.f32 %v1100, %v1111
        %s1114 = sld [smem:[#allocation16 + $0x281]]
        %v1115 = vstv %s1114
        %v1116 = vmul.f32 %v738, %v1115
        %v1117 = vmul.f32 %v739, %v1115
        %v1120 = vrot.slane %v1116, 1
        %v1121 = vrot.slane %v1117, 1
        %v1122 = vsel %vm826, %v1120, %v1121
        %1123 = vrot.lane.b32.xlu0 %v1122, 126
        %v1124 = vpop.permute.xlu0 %1123
        %v1126 = vadd.f32 %v1113, %v1124
        %s1127 = sld [smem:[#allocation14 + $0x301]]
        %v1128 = vstv %s1127
        %v1129 = vmul.f32 %v1011, %v1128
        %v1130 = vmul.f32 %v1012, %v1128
        %v1133 = vrot.slane %v1129, 2
        %v1134 = vrot.slane %v1130, 2
        %v1135 = vsel %vm901, %v1133, %v1134
        %v1137 = vadd.f32 %v1126, %v1135
        %s1138 = sld [smem:[#allocation16 + $0x301]]
        %v1139 = vstv %s1138
        %v1140 = vmul.f32 %v738, %v1139
        %v1141 = vmul.f32 %v739, %v1139
        %v1144 = vrot.slane %v1140, 2
        %v1145 = vrot.slane %v1141, 2
        %v1146 = vsel %vm901, %v1144, %v1145
        %v1148 = vadd.f32 %v1137, %v1146
        %s1149 = sld [smem:[#allocation14 + $0x381]]
        %v1150 = vstv %s1149
        %v1151 = vmul.f32 %v1011, %v1150
        %v1152 = vmul.f32 %v1012, %v1150
        %v1155 = vrot.slane %v1151, 2
        %v1156 = vrot.slane %v1152, 2
        %v1157 = vsel %vm901, %v1155, %v1156
        %1158 = vrot.lane.b32.xlu0 %v1157, 127
        %v1159 = vpop.permute.xlu0 %1158
        %v1161 = vadd.f32 %v1148, %v1159
        %s1162 = sld [smem:[#allocation16 + $0x381]]
        %v1163 = vstv %s1162
        %v1164 = vmul.f32 %v738, %v1163
        %v1165 = vmul.f32 %v739, %v1163
        %v1168 = vrot.slane %v1164, 2
        %v1169 = vrot.slane %v1165, 2
        %v1170 = vsel %vm901, %v1168, %v1169
        %1171 = vrot.lane.b32.xlu0 %v1170, 127
        %v1172 = vpop.permute.xlu0 %1171
        %v1174 = vadd.f32 %v1161, %v1172
        %s1175 = sld [smem:[#allocation14 + $0x401]]
        %v1176 = vstv %s1175
        %v1177 = vmul.f32 %v1011, %v1176
        %v1178 = vmul.f32 %v1012, %v1176
        %v1181 = vrot.slane %v1177, 2
        %v1182 = vrot.slane %v1178, 2
        %v1183 = vsel %vm901, %v1181, %v1182
        %1184 = vrot.lane.b32.xlu0 %v1183, 126
        %v1185 = vpop.permute.xlu0 %1184
        %v1187 = vadd.f32 %v1174, %v1185
        %s1188 = sld [smem:[#allocation16 + $0x401]]
        %v1189 = vstv %s1188
        %v1190 = vmul.f32 %v738, %v1189
        %v1191 = vmul.f32 %v739, %v1189
        %v1194 = vrot.slane %v1190, 2
        %v1195 = vrot.slane %v1191, 2
        %v1196 = vsel %vm901, %v1194, %v1195
        %1197 = vrot.lane.b32.xlu0 %v1196, 126
        %v1198 = vpop.permute.xlu0 %1197
        %v1200 = vadd.f32 %v1187, %v1198
        %s1201 = sld [smem:[#allocation17 + $0x1]]
        %v1202 = vstv %s1201
        %v1203 = vmul.f32 %v1200, %v1202
        %s1204 = sld [smem:[#allocation19 + $0x1]]
        %v1205 = vstv %s1204
        %v1206 = vadd.f32 %v1203, %v1205
        %v1207 = vmax.f32 %v1206, 0.0
        %s1208 = scalar_lea.vmem %s588, 8 [#allocation20]
        %1209 = vst.msk [vmem:[%s1208] sm:$0xff] %vm977, %v1207
        %s1210 = sld [smem:[#allocation10 + $0x2]]
        %v1211 = vstv %s1210
        %v1212 = vmul.f32 %v735, %v1211
        %v1213 = vmul.f32 %v736, %v1211
        %s1214 = sld [smem:[#allocation10 + $0x82]]
        %v1215 = vstv %s1214
        %v1216 = vmul.f32 %v738, %v1215
        %v1217 = vmul.f32 %v739, %v1215
        %v1218 = vadd.f32 %v1212, %v1216
        %v1219 = vadd.f32 %v1213, %v1217
        %s1220 = sld [smem:[#allocation10 + $0x102]]
        %v1221 = vstv %s1220
        %v1222 = vmul.f32 %v741, %v1221
        %v1223 = vmul.f32 %v742, %v1221
        %v1224 = vadd.f32 %v1218, %v1222
        %v1225 = vadd.f32 %v1219, %v1223
        %s1226 = sld [smem:[#allocation10 + $0x182]]
        %v1227 = vstv %s1226
        %v1228 = vmul.f32 %v744, %v1227
        %v1229 = vmul.f32 %v745, %v1227
        %v1230 = vadd.f32 %v1224, %v1228
        %v1231 = vadd.f32 %v1225, %v1229
        %s1232 = sld [smem:[#allocation11 + $0x2]]
        %v1233 = vstv %s1232
        %v1234 = vmul.f32 %v1230, %v1233
        %v1235 = vmul.f32 %v1231, %v1233
        %s1236 = sld [smem:[#allocation13 + $0x2]]
        %v1237 = vstv %s1236
        %v1238 = vadd.f32 %v1234, %v1237
        %v1239 = vadd.f32 %v1235, %v1237
        %v1240 = vmax.f32 %v1238, 0.0
        %v1241 = vmax.f32 %v1239, 0.0
        %v1242 = vsel %vm614, %v1240, 0.0
        %v1243 = vsel %vm615, %v1241, 0.0
        %s1244 = sld [smem:[#allocation14 + $0x2]]
        %v1245 = vstv %s1244
        %v1246 = vmul.f32 %v1242, %v1245
        %v1247 = vadd.f32 %v1246, 0.0
        %s1248 = sld [smem:[#allocation16 + $0x2]]
        %v1249 = vstv %s1248
        %v1250 = vmul.f32 %v741, %v1249
        %v1251 = vadd.f32 %v1247, %v1250
        %s1252 = sld [smem:[#allocation14 + $0x82]]
        %v1253 = vstv %s1252
        %v1254 = vmul.f32 %v1242, %v1253
        %1256 = vrot.lane.b32.xlu0 %v1254, 127
        %v1257 = vpop.permute.xlu0 %1256
        %v1259 = vadd.f32 %v1251, %v1257
        %s1260 = sld [smem:[#allocation16 + $0x82]]
        %v1261 = vstv %s1260
        %v1262 = vmul.f32 %v741, %v1261
        %1264 = vrot.lane.b32.xlu0 %v1262, 127
        %v1265 = vpop.permute.xlu0 %1264
        %v1267 = vadd.f32 %v1259, %v1265
        %s1268 = sld [smem:[#allocation14 + $0x102]]
        %v1269 = vstv %s1268
        %v1270 = vmul.f32 %v1242, %v1269
        %1272 = vrot.lane.b32.xlu0 %v1270, 126
        %v1273 = vpop.permute.xlu0 %1272
        %v1275 = vadd.f32 %v1267, %v1273
        %s1276 = sld [smem:[#allocation16 + $0x102]]
        %v1277 = vstv %s1276
        %v1278 = vmul.f32 %v741, %v1277
        %1280 = vrot.lane.b32.xlu0 %v1278, 126
        %v1281 = vpop.permute.xlu0 %1280
        %v1283 = vadd.f32 %v1275, %v1281
        %s1284 = sld [smem:[#allocation14 + $0x182]]
        %v1285 = vstv %s1284
        %v1286 = vmul.f32 %v1242, %v1285
        %v1287 = vmul.f32 %v1243, %v1285
        %v1290 = vrot.slane %v1286, 1
        %v1291 = vrot.slane %v1287, 1
        %v1292 = vsel %vm826, %v1290, %v1291
        %v1294 = vadd.f32 %v1283, %v1292
        %s1295 = sld [smem:[#allocation16 + $0x182]]
        %v1296 = vstv %s1295
        %v1297 = vmul.f32 %v741, %v1296
        %v1298 = vmul.f32 %v742, %v1296
        %v1301 = vrot.slane %v1297, 1
        %v1302 = vrot.slane %v1298, 1
        %v1303 = vsel %vm826, %v1301, %v1302
        %v1305 = vadd.f32 %v1294, %v1303
        %s1306 = sld [smem:[#allocation14 + $0x202]]
        %v1307 = vstv %s1306
        %v1308 = vmul.f32 %v1242, %v1307
        %v1309 = vmul.f32 %v1243, %v1307
        %v1312 = vrot.slane %v1308, 1
        %v1313 = vrot.slane %v1309, 1
        %v1314 = vsel %vm826, %v1312, %v1313
        %1315 = vrot.lane.b32.xlu0 %v1314, 127
        %v1316 = vpop.permute.xlu0 %1315
        %v1318 = vadd.f32 %v1305, %v1316
        %s1319 = sld [smem:[#allocation16 + $0x202]]
        %v1320 = vstv %s1319
        %v1321 = vmul.f32 %v741, %v1320
        %v1322 = vmul.f32 %v742, %v1320
        %v1325 = vrot.slane %v1321, 1
        %v1326 = vrot.slane %v1322, 1
        %v1327 = vsel %vm826, %v1325, %v1326
        %1328 = vrot.lane.b32.xlu0 %v1327, 127
        %v1329 = vpop.permute.xlu0 %1328
        %v1331 = vadd.f32 %v1318, %v1329
        %s1332 = sld [smem:[#allocation14 + $0x282]]
        %v1333 = vstv %s1332
        %v1334 = vmul.f32 %v1242, %v1333
        %v1335 = vmul.f32 %v1243, %v1333
        %v1338 = vrot.slane %v1334, 1
        %v1339 = vrot.slane %v1335, 1
        %v1340 = vsel %vm826, %v1338, %v1339
        %1341 = vrot.lane.b32.xlu0 %v1340, 126
        %v1342 = vpop.permute.xlu0 %1341
        %v1344 = vadd.f32 %v1331, %v1342
        %s1345 = sld [smem:[#allocation16 + $0x282]]
        %v1346 = vstv %s1345
        %v1347 = vmul.f32 %v741, %v1346
        %v1348 = vmul.f32 %v742, %v1346
        %v1351 = vrot.slane %v1347, 1
        %v1352 = vrot.slane %v1348, 1
        %v1353 = vsel %vm826, %v1351, %v1352
        %1354 = vrot.lane.b32.xlu0 %v1353, 126
        %v1355 = vpop.permute.xlu0 %1354
        %v1357 = vadd.f32 %v1344, %v1355
        %s1358 = sld [smem:[#allocation14 + $0x302]]
        %v1359 = vstv %s1358
        %v1360 = vmul.f32 %v1242, %v1359
        %v1361 = vmul.f32 %v1243, %v1359
        %v1364 = vrot.slane %v1360, 2
        %v1365 = vrot.slane %v1361, 2
        %v1366 = vsel %vm901, %v1364, %v1365
        %v1368 = vadd.f32 %v1357, %v1366
        %s1369 = sld [smem:[#allocation16 + $0x302]]
        %v1370 = vstv %s1369
        %v1371 = vmul.f32 %v741, %v1370
        %v1372 = vmul.f32 %v742, %v1370
        %v1375 = vrot.slane %v1371, 2
        %v1376 = vrot.slane %v1372, 2
        %v1377 = vsel %vm901, %v1375, %v1376
        %v1379 = vadd.f32 %v1368, %v1377
        %s1380 = sld [smem:[#allocation14 + $0x382]]
        %v1381 = vstv %s1380
        %v1382 = vmul.f32 %v1242, %v1381
        %v1383 = vmul.f32 %v1243, %v1381
        %v1386 = vrot.slane %v1382, 2
        %v1387 = vrot.slane %v1383, 2
        %v1388 = vsel %vm901, %v1386, %v1387
        %1389 = vrot.lane.b32.xlu0 %v1388, 127
        %v1390 = vpop.permute.xlu0 %1389
        %v1392 = vadd.f32 %v1379, %v1390
        %s1393 = sld [smem:[#allocation16 + $0x382]]
        %v1394 = vstv %s1393
        %v1395 = vmul.f32 %v741, %v1394
        %v1396 = vmul.f32 %v742, %v1394
        %v1399 = vrot.slane %v1395, 2
        %v1400 = vrot.slane %v1396, 2
        %v1401 = vsel %vm901, %v1399, %v1400
        %1402 = vrot.lane.b32.xlu0 %v1401, 127
        %v1403 = vpop.permute.xlu0 %1402
        %v1405 = vadd.f32 %v1392, %v1403
        %s1406 = sld [smem:[#allocation14 + $0x402]]
        %v1407 = vstv %s1406
        %v1408 = vmul.f32 %v1242, %v1407
        %v1409 = vmul.f32 %v1243, %v1407
        %v1412 = vrot.slane %v1408, 2
        %v1413 = vrot.slane %v1409, 2
        %v1414 = vsel %vm901, %v1412, %v1413
        %1415 = vrot.lane.b32.xlu0 %v1414, 126
        %v1416 = vpop.permute.xlu0 %1415
        %v1418 = vadd.f32 %v1405, %v1416
        %s1419 = sld [smem:[#allocation16 + $0x402]]
        %v1420 = vstv %s1419
        %v1421 = vmul.f32 %v741, %v1420
        %v1422 = vmul.f32 %v742, %v1420
        %v1425 = vrot.slane %v1421, 2
        %v1426 = vrot.slane %v1422, 2
        %v1427 = vsel %vm901, %v1425, %v1426
        %1428 = vrot.lane.b32.xlu0 %v1427, 126
        %v1429 = vpop.permute.xlu0 %1428
        %v1431 = vadd.f32 %v1418, %v1429
        %s1432 = sld [smem:[#allocation17 + $0x2]]
        %v1433 = vstv %s1432
        %v1434 = vmul.f32 %v1431, %v1433
        %s1435 = sld [smem:[#allocation19 + $0x2]]
        %v1436 = vstv %s1435
        %v1437 = vadd.f32 %v1434, %v1436
        %v1438 = vmax.f32 %v1437, 0.0
        %s1439 = scalar_lea.vmem %s588, 16 [#allocation20]
        %1440 = vst.msk [vmem:[%s1439] sm:$0xff] %vm977, %v1438
        %s1441 = sld [smem:[#allocation10 + $0x3]]
        %v1442 = vstv %s1441
        %v1443 = vmul.f32 %v735, %v1442
        %v1444 = vmul.f32 %v736, %v1442
        %s1445 = sld [smem:[#allocation10 + $0x83]]
        %v1446 = vstv %s1445
        %v1447 = vmul.f32 %v738, %v1446
        %v1448 = vmul.f32 %v739, %v1446
        %v1449 = vadd.f32 %v1443, %v1447
        %v1450 = vadd.f32 %v1444, %v1448
        %s1451 = sld [smem:[#allocation10 + $0x103]]
        %v1452 = vstv %s1451
        %v1453 = vmul.f32 %v741, %v1452
        %v1454 = vmul.f32 %v742, %v1452
        %v1455 = vadd.f32 %v1449, %v1453
        %v1456 = vadd.f32 %v1450, %v1454
        %s1457 = sld [smem:[#allocation10 + $0x183]]
        %v1458 = vstv %s1457
        %v1459 = vmul.f32 %v744, %v1458
        %v1460 = vmul.f32 %v745, %v1458
        %v1461 = vadd.f32 %v1455, %v1459
        %v1462 = vadd.f32 %v1456, %v1460
        %s1463 = sld [smem:[#allocation11 + $0x3]]
        %v1464 = vstv %s1463
        %v1465 = vmul.f32 %v1461, %v1464
        %v1466 = vmul.f32 %v1462, %v1464
        %s1467 = sld [smem:[#allocation13 + $0x3]]
        %v1468 = vstv %s1467
        %v1469 = vadd.f32 %v1465, %v1468
        %v1470 = vadd.f32 %v1466, %v1468
        %v1471 = vmax.f32 %v1469, 0.0
        %v1472 = vmax.f32 %v1470, 0.0
        %v1473 = vsel %vm614, %v1471, 0.0
        %v1474 = vsel %vm615, %v1472, 0.0
        %s1475 = sld [smem:[#allocation14 + $0x3]]
        %v1476 = vstv %s1475
        %v1477 = vmul.f32 %v1473, %v1476
        %v1478 = vadd.f32 %v1477, 0.0
        %s1479 = sld [smem:[#allocation16 + $0x3]]
        %v1480 = vstv %s1479
        %v1481 = vmul.f32 %v744, %v1480
        %v1482 = vadd.f32 %v1478, %v1481
        %s1483 = sld [smem:[#allocation14 + $0x83]]
        %v1484 = vstv %s1483
        %v1485 = vmul.f32 %v1473, %v1484
        %1487 = vrot.lane.b32.xlu0 %v1485, 127
        %v1488 = vpop.permute.xlu0 %1487
        %v1490 = vadd.f32 %v1482, %v1488
        %s1491 = sld [smem:[#allocation16 + $0x83]]
        %v1492 = vstv %s1491
        %v1493 = vmul.f32 %v744, %v1492
        %1495 = vrot.lane.b32.xlu0 %v1493, 127
        %v1496 = vpop.permute.xlu0 %1495
        %v1498 = vadd.f32 %v1490, %v1496
        %s1499 = sld [smem:[#allocation14 + $0x103]]
        %v1500 = vstv %s1499
        %v1501 = vmul.f32 %v1473, %v1500
        %1503 = vrot.lane.b32.xlu0 %v1501, 126
        %v1504 = vpop.permute.xlu0 %1503
        %v1506 = vadd.f32 %v1498, %v1504
        %s1507 = sld [smem:[#allocation16 + $0x103]]
        %v1508 = vstv %s1507
        %v1509 = vmul.f32 %v744, %v1508
        %1511 = vrot.lane.b32.xlu0 %v1509, 126
        %v1512 = vpop.permute.xlu0 %1511
        %v1514 = vadd.f32 %v1506, %v1512
        %s1515 = sld [smem:[#allocation14 + $0x183]]
        %v1516 = vstv %s1515
        %v1517 = vmul.f32 %v1473, %v1516
        %v1518 = vmul.f32 %v1474, %v1516
        %v1521 = vrot.slane %v1517, 1
        %v1522 = vrot.slane %v1518, 1
        %v1523 = vsel %vm826, %v1521, %v1522
        %v1525 = vadd.f32 %v1514, %v1523
        %s1526 = sld [smem:[#allocation16 + $0x183]]
        %v1527 = vstv %s1526
        %v1528 = vmul.f32 %v744, %v1527
        %v1529 = vmul.f32 %v745, %v1527
        %v1532 = vrot.slane %v1528, 1
        %v1533 = vrot.slane %v1529, 1
        %v1534 = vsel %vm826, %v1532, %v1533
        %v1536 = vadd.f32 %v1525, %v1534
        %s1537 = sld [smem:[#allocation14 + $0x203]]
        %v1538 = vstv %s1537
        %v1539 = vmul.f32 %v1473, %v1538
        %v1540 = vmul.f32 %v1474, %v1538
        %v1543 = vrot.slane %v1539, 1
        %v1544 = vrot.slane %v1540, 1
        %v1545 = vsel %vm826, %v1543, %v1544
        %1546 = vrot.lane.b32.xlu0 %v1545, 127
        %v1547 = vpop.permute.xlu0 %1546
        %v1549 = vadd.f32 %v1536, %v1547
        %s1550 = sld [smem:[#allocation16 + $0x203]]
        %v1551 = vstv %s1550
        %v1552 = vmul.f32 %v744, %v1551
        %v1553 = vmul.f32 %v745, %v1551
        %v1556 = vrot.slane %v1552, 1
        %v1557 = vrot.slane %v1553, 1
        %v1558 = vsel %vm826, %v1556, %v1557
        %1559 = vrot.lane.b32.xlu0 %v1558, 127
        %v1560 = vpop.permute.xlu0 %1559
        %v1562 = vadd.f32 %v1549, %v1560
        %s1563 = sld [smem:[#allocation14 + $0x283]]
        %v1564 = vstv %s1563
        %v1565 = vmul.f32 %v1473, %v1564
        %v1566 = vmul.f32 %v1474, %v1564
        %v1569 = vrot.slane %v1565, 1
        %v1570 = vrot.slane %v1566, 1
        %v1571 = vsel %vm826, %v1569, %v1570
        %1572 = vrot.lane.b32.xlu0 %v1571, 126
        %v1573 = vpop.permute.xlu0 %1572
        %v1575 = vadd.f32 %v1562, %v1573
        %s1576 = sld [smem:[#allocation16 + $0x283]]
        %v1577 = vstv %s1576
        %v1578 = vmul.f32 %v744, %v1577
        %v1579 = vmul.f32 %v745, %v1577
        %v1582 = vrot.slane %v1578, 1
        %v1583 = vrot.slane %v1579, 1
        %v1584 = vsel %vm826, %v1582, %v1583
        %1585 = vrot.lane.b32.xlu0 %v1584, 126
        %v1586 = vpop.permute.xlu0 %1585
        %v1588 = vadd.f32 %v1575, %v1586
        %s1589 = sld [smem:[#allocation14 + $0x303]]
        %v1590 = vstv %s1589
        %v1591 = vmul.f32 %v1473, %v1590
        %v1592 = vmul.f32 %v1474, %v1590
        %v1595 = vrot.slane %v1591, 2
        %v1596 = vrot.slane %v1592, 2
        %v1597 = vsel %vm901, %v1595, %v1596
        %v1599 = vadd.f32 %v1588, %v1597
        %s1600 = sld [smem:[#allocation16 + $0x303]]
        %v1601 = vstv %s1600
        %v1602 = vmul.f32 %v744, %v1601
        %v1603 = vmul.f32 %v745, %v1601
        %v1606 = vrot.slane %v1602, 2
        %v1607 = vrot.slane %v1603, 2
        %v1608 = vsel %vm901, %v1606, %v1607
        %v1610 = vadd.f32 %v1599, %v1608
        %s1611 = sld [smem:[#allocation14 + $0x383]]
        %v1612 = vstv %s1611
        %v1613 = vmul.f32 %v1473, %v1612
        %v1614 = vmul.f32 %v1474, %v1612
        %v1617 = vrot.slane %v1613, 2
        %v1618 = vrot.slane %v1614, 2
        %v1619 = vsel %vm901, %v1617, %v1618
        %1620 = vrot.lane.b32.xlu0 %v1619, 127
        %v1621 = vpop.permute.xlu0 %1620
        %v1623 = vadd.f32 %v1610, %v1621
        %s1624 = sld [smem:[#allocation16 + $0x383]]
        %v1625 = vstv %s1624
        %v1626 = vmul.f32 %v744, %v1625
        %v1627 = vmul.f32 %v745, %v1625
        %v1630 = vrot.slane %v1626, 2
        %v1631 = vrot.slane %v1627, 2
        %v1632 = vsel %vm901, %v1630, %v1631
        %1633 = vrot.lane.b32.xlu0 %v1632, 127
        %v1634 = vpop.permute.xlu0 %1633
        %v1636 = vadd.f32 %v1623, %v1634
        %s1637 = sld [smem:[#allocation14 + $0x403]]
        %v1638 = vstv %s1637
        %v1639 = vmul.f32 %v1473, %v1638
        %v1640 = vmul.f32 %v1474, %v1638
        %v1643 = vrot.slane %v1639, 2
        %v1644 = vrot.slane %v1640, 2
        %v1645 = vsel %vm901, %v1643, %v1644
        %1646 = vrot.lane.b32.xlu0 %v1645, 126
        %v1647 = vpop.permute.xlu0 %1646
        %v1649 = vadd.f32 %v1636, %v1647
        %s1650 = sld [smem:[#allocation16 + $0x403]]
        %v1651 = vstv %s1650
        %v1652 = vmul.f32 %v744, %v1651
        %v1653 = vmul.f32 %v745, %v1651
        %v1656 = vrot.slane %v1652, 2
        %v1657 = vrot.slane %v1653, 2
        %v1658 = vsel %vm901, %v1656, %v1657
        %1659 = vrot.lane.b32.xlu0 %v1658, 126
        %v1660 = vpop.permute.xlu0 %1659
        %v1662 = vadd.f32 %v1649, %v1660
        %s1663 = sld [smem:[#allocation17 + $0x3]]
        %v1664 = vstv %s1663
        %v1665 = vmul.f32 %v1662, %v1664
        %s1666 = sld [smem:[#allocation19 + $0x3]]
        %v1667 = vstv %s1666
        %v1668 = vadd.f32 %v1665, %v1667
        %v1669 = vmax.f32 %v1668, 0.0
        %s1670 = scalar_lea.vmem %s588, 24 [#allocation20]
        %1671 = vst.msk [vmem:[%s1670] sm:$0xff] %vm977, %v1669
        %s1672 = sand.u32 %s299, 1
        %s1673 = scalar_lea.sflag [#allocation5], %s1672
        %s1674 = sand.u32 %s299, 1
        %s1675 = smul.addr %s1674, 32
        %s1676 = scalar_lea.vmem [#allocation20], %s1675
        // Predicated region
        $region101: #{tpu_custom_call.1} parent=59 // pred_check
          %p1677 = pneg %p309
        $region102: #{tpu_custom_call.1} parent=59 // pred_check_branch
          %1679 = sbr.rel (%p1677) target = $region104
        $region103: #{tpu_custom_call.1} parent=59 // pred_region
          %s1681 = ssub.s32 512, 512
          %1682 = vsyncadd %s1673, %s1681
          %s1683 = smul.addr %s38, 8
          %s1684 = sadd.s32 %s39, %s1683
          %s1685 = smul.addr %s1684, 128
          %s1686 = scalar_lea.hbm %s10, %s1685
          %s1687 = sshll.u32 %s1676, 4
          %s1688 = int_to_ptr.vmem [resolvable:$true] %s1687
          %1693 = dma.vmem_to_hbm [thread:$0]  %s1688, 512, %s1686, %s1673, 128, 256, 8
        $region104: #{tpu_custom_call.1} parent=59 // pred_fallthru
          _
      $region60: #{tpu_custom_call.1} parent=5 // pred_fallthru
        _
      %p1694 = scmp.le.s32.totalorder 2, %s29
      // Predicated region
      $region105: #{tpu_custom_call.1} parent=5 // pred_check
        %p1695 = pneg %p1694
      $region106: #{tpu_custom_call.1} parent=5 // pred_check_branch
        %1697 = sbr.rel (%p1695) target = $region108
      $region107: #{tpu_custom_call.1} parent=5 // pred_region
        %s1698 = ssub.s32 %s29, 2
        // Predicated region
        $region109: #{tpu_custom_call.1} parent=107 // pred_check
          %p1699 = pneg %p315
        $region110: #{tpu_custom_call.1} parent=107 // pred_check_branch
          %1701 = sbr.rel (%p1699) target = $region112
        $region111: #{tpu_custom_call.1} parent=107 // pred_region
          %s1702 = sand.u32 %s300, 1
          %s1703 = scalar_lea.sflag [#allocation5], %s1702
          %s1704 = sand.u32 %s300, 1
          %s1705 = smul.addr %s1704, 32
          %s1706 = scalar_lea.vmem [#allocation20], %s1705
          %1707 = dma.done %s1703, 512
        $region112: #{tpu_custom_call.1} parent=107 // pred_fallthru
          _
      $region108: #{tpu_custom_call.1} parent=5 // pred_fallthru
        _
    $region6: #{tpu_custom_call.1} parent=1 // loop_footer
      %s33 = sadd.s32 1, %s29
    $region7: #{tpu_custom_call.1} parent=1 // loop_footer_branch
      %28 = sbr.rel target = $region3
    $region8: #{tpu_custom_call.1} parent=1 // loop_exit
      _
    %1708 = vsyncpa [#allocation4], 1
    %s1709 = scalar_lea.sflag [#allocation4], 1
    %1710 = vsyncpa %s1709, 1
    %1711 = vsyncpa [#allocation8], 1
    %s1712 = scalar_lea.sflag [#allocation8], 1
    %1713 = vsyncpa %s1712, 1
    %1714 = vsyncpa [#allocation5], 1
    %s1715 = scalar_lea.sflag [#allocation5], 1
    %1716 = vsyncpa %s1715, 1
    %1717 = vsyncpa [#allocation6], 1
    %s1718 = scalar_lea.sflag [#allocation6], 1
    %1719 = vsyncpa %s1718, 1
    %1720 = vsyncpa [#allocation12], 1
    %1721 = vsyncpa [#allocation15], 1
    %1722 = vsyncpa [#allocation18], 1

</llo_original>
